<compile_context>
chip_gen: v5e
topology: v5e:2x2
jax: 0.10.0
libtpu: 0.0.40
codegen_flags: <defaults>
</compile_context>

<pallas_src>
import jax
import jax.numpy as jnp
from jax.experimental import pallas as pl
from jax.experimental.pallas import tpu as pltpu


def _encoder_kernel(adj_ref, inp_ref, w1_ref, b1_ref, w2_ref, b2_ref, c_ref,
                    x_ref, logits_ref):
    """One grid step == one batch tile laid out as (d, features, bt) with the
    batch on the lane axis.  d is small and static, so the per-node loops are
    unrolled at trace time."""
    d = inp_ref.shape[0]

    w1 = w1_ref[...]           # (n_hid, n_xdims)   PyTorch Linear layout
    b1 = b1_ref[...]           # (n_hid, 1)
    w2 = w2_ref[...]           # (n_out, n_hid)
    b2 = b2_ref[...]           # (n_out, 1)

    # fc1 -> ReLU -> fc2, one (n_xdims, bt) slab per graph node j.  Lane-dense
    # MXU matmuls with the batch filling the N dimension.
    for j in range(d):
        h = jnp.dot(w1, inp_ref[j], preferred_element_type=jnp.float32)
        h = jnp.maximum(h + b1, 0.0)                       # F.relu
        x_ref[j] = jnp.dot(w2, h, preferred_element_type=jnp.float32) + b2

    # logits[i] = sum_j A[i, j] * x[j] + C[i]
    # (Wa folded into C in the wrapper; A read as scalars from SMEM and splat
    #  against lane-dense (n_out, bt) slabs on the VPU -- exact, no redundant
    #  block-diagonal MXU work.)
    for i in range(d):
        acc = c_ref[i] + adj_ref[i, 0] * x_ref[0]
        for j in range(1, d):
            acc = acc + adj_ref[i, j] * x_ref[j]
        logits_ref[i] = acc


def _ceil_to(x, m):
    return -(-x // m) * m


def _choose_batch_tile(batch, max_tile=2048):
    """Batch tile along the lane axis: must be a multiple of 128.  Always use
    >=2 grid steps so the (parallel) batch axis can be sharded across both
    TensorCores on v7x; on v5e/v6e the extra padded step is negligible."""
    half = -(-batch // 2)
    bt = min(max_tile, max(128, _ceil_to(half, 128)))
    steps = max(2, -(-batch // bt))
    return bt, steps


def mlp_encoder_forward(inputs, w1, b1, w2, b2, adj_A, Wa, *, max_batch_tile=2048):
    """inputs: (B, d, n_xdims).  Weights in PyTorch Linear layout:
    w1: (n_hid, n_xdims), b1: (n_hid,), w2: (n_out, n_hid), b2: (n_out,),
    adj_A: (d, d), Wa: (n_out,)."""
    B, d, n_xdims = inputs.shape
    n_hid = w1.shape[0]
    n_out = w2.shape[0]
    f32 = jnp.float32

    # --- batch-invariant preprocessing, hoisted out of the kernel ------------
    adj_A1 = jnp.sinh(3.0 * adj_A.astype(f32))                      # (d, d)
    adj_Aforz = jnp.eye(d, dtype=f32) - adj_A1.T                    # I - A1^T
    # logits = A @ (x + Wa) - Wa  ==  A @ x + C,  C = (A.sum(1) - 1) * Wa
    c_fold = (jnp.sum(adj_Aforz, axis=1, keepdims=True) - 1.0) * Wa.astype(f32)[None, :]
    c_fold = c_fold.reshape(d, n_out, 1)                            # (d, n_out, 1)

    # --- lane-major layout: batch on the last (128-lane) axis ----------------
    bt, steps = _choose_batch_tile(B, max_batch_tile)
    Bp = bt * steps
    inp_t = jnp.transpose(inputs.astype(f32), (1, 2, 0))            # (d, n_xdims, B)
    inp_t = jnp.pad(inp_t, ((0, 0), (0, 0), (0, Bp - B)))           # zero-pad batch

    b1c = b1.astype(f32).reshape(n_hid, 1)
    b2c = b2.astype(f32).reshape(n_out, 1)

    # Per-step VMEM (double-buffered): ~(d*n_xdims + 2*d*n_out)*4B*bt*2
    # ~= 4 MiB at bt=2048 -- fits v5e's 16 MiB scoped default, v6e/v7x easily.
    x_t, logits_t = pl.pallas_call(
        _encoder_kernel,
        out_shape=(
            jax.ShapeDtypeStruct((d, n_out, Bp), f32),               # x (transposed)
            jax.ShapeDtypeStruct((d, n_out, Bp), f32),               # logits (transposed)
        ),
        grid_spec=pltpu.PrefetchScalarGridSpec(
            num_scalar_prefetch=0,
            grid=(steps,),
            in_specs=[
                pl.BlockSpec(memory_space=pltpu.MemorySpace.SMEM),        # adj_Aforz (d,d) scalars
                pl.BlockSpec((d, n_xdims, bt), lambda i: (0, 0, i)),      # inputs, lane-dense
                pl.BlockSpec((n_hid, n_xdims), lambda i: (0, 0)),         # W1
                pl.BlockSpec((n_hid, 1), lambda i: (0, 0)),               # b1
                pl.BlockSpec((n_out, n_hid), lambda i: (0, 0)),           # W2
                pl.BlockSpec((n_out, 1), lambda i: (0, 0)),               # b2
                pl.BlockSpec((d, n_out, 1), lambda i: (0, 0, 0)),         # folded Wa term C
            ],
            out_specs=[
                pl.BlockSpec((d, n_out, bt), lambda i: (0, 0, i)),        # x, lane-dense
                pl.BlockSpec((d, n_out, bt), lambda i: (0, 0, i)),        # logits, lane-dense
            ],
        ),
        compiler_params=pltpu.CompilerParams(
            dimension_semantics=("parallel",)),
    )(adj_Aforz, inp_t, w1.astype(f32), b1c, w2.astype(f32), b2c, c_fold)

    # Un-transpose / un-pad (wrapper-side layout plumbing).
    x = jnp.transpose(x_t[:, :, :B], (2, 0, 1))                      # (B, d, n_out)
    logits = jnp.transpose(logits_t[:, :, :B], (2, 0, 1))            # (B, d, n_out)
    return x, logits, adj_A1, Wa


def _reference(inputs, w1, b1, w2, b2, adj_A, Wa):
    adj_A1 = jnp.sinh(3.0 * adj_A)
    d = adj_A.shape[0]
    adj_Aforz = jnp.eye(d, dtype=jnp.float32) - adj_A1.T
    H1 = jax.nn.relu(inputs @ w1.T + b1)
    x = H1 @ w2.T + b2
    logits = jnp.einsum('ij,bjk->bik', adj_Aforz, x + Wa) - Wa
    return x, logits, adj_A1, Wa


def _xavier_normal(key, fan_out, fan_in):
    std = (2.0 / (fan_in + fan_out)) ** 0.5
    # PyTorch Linear weight layout: (out_features, in_features)
    return std * jax.random.normal(key, (fan_out, fan_in), dtype=jnp.float32)


if __name__ == "__main__":
    # Small shapes: batch=2, d (num variables)=8, n_xdims=16, n_hid=32, n_out=8
    B, d, n_xdims, n_hid, n_out = 2, 8, 16, 32, 8

    key = jax.random.PRNGKey(0)
    k_in, k_w1, k_w2, k_adj, k_wa = jax.random.split(key, 5)

    inputs = jax.random.normal(k_in, (B, d, n_xdims), dtype=jnp.float32)
    w1 = _xavier_normal(k_w1, n_hid, n_xdims)
    b1 = jnp.zeros((n_hid,), jnp.float32)
    w2 = _xavier_normal(k_w2, n_out, n_hid)
    b2 = jnp.zeros((n_out,), jnp.float32)
    adj_A = 0.1 * jax.random.normal(k_adj, (d, d), dtype=jnp.float32)
    # Module init is zeros; use nonzero values here to exercise the folded-Wa path.
    Wa = 0.1 * jax.random.normal(k_wa, (n_out,), dtype=jnp.float32)

    x, logits, adj_A1, Wa_out = mlp_encoder_forward(inputs, w1, b1, w2, b2, adj_A, Wa)
    jax.block_until_ready((x, logits, adj_A1, Wa_out))

    x_r, logits_r, adj_A1_r, _ = _reference(inputs, w1, b1, w2, b2, adj_A, Wa)
    assert jnp.allclose(x, x_r, atol=1e-5), "x mismatch"
    assert jnp.allclose(logits, logits_r, atol=1e-5), "logits mismatch"
    assert jnp.allclose(adj_A1, adj_A1_r, atol=1e-6), "adj_A1 mismatch"

    print("KERNEL_OK")
</pallas_src>

<mosaic_0001>
module attributes {stable_mosaic.version = 11 : i64} {
  func.func @_encoder_kernel(%arg0: i32, %arg1: memref<8x8xf32, #tpu.memory_space<smem>>, %arg2: memref<8x16x128xf32, #tpu.memory_space<vmem>>, %arg3: memref<32x16xf32, #tpu.memory_space<vmem>>, %arg4: memref<32x1xf32, #tpu.memory_space<vmem>>, %arg5: memref<8x32xf32, #tpu.memory_space<vmem>>, %arg6: memref<8x1xf32, #tpu.memory_space<vmem>>, %arg7: memref<8x8x1xf32, #tpu.memory_space<vmem>>, %arg8: memref<8x8x128xf32, #tpu.memory_space<vmem>>, %arg9: memref<8x8x128xf32, #tpu.memory_space<vmem>>) attributes {dimension_semantics = [#tpu.dimension_semantics<parallel>], iteration_bounds = array<i64: 2>, scalar_prefetch = 0 : i64, scratch_operands = 0 : i64, tpu.core_type = #tpu.core_type<tc>, window_params = [{transform_indices = @transform_0, window_bounds = array<i64: 8, 8>}, {transform_indices = @transform_1, window_bounds = array<i64: 8, 16, 128>}, {pipeline_mode = #tpu.pipeline_mode<synchronous>, transform_indices = @transform_2, window_bounds = array<i64: 32, 16>}, {pipeline_mode = #tpu.pipeline_mode<synchronous>, transform_indices = @transform_3, window_bounds = array<i64: 32, 1>}, {pipeline_mode = #tpu.pipeline_mode<synchronous>, transform_indices = @transform_4, window_bounds = array<i64: 8, 32>}, {pipeline_mode = #tpu.pipeline_mode<synchronous>, transform_indices = @transform_5, window_bounds = array<i64: 8, 1>}, {pipeline_mode = #tpu.pipeline_mode<synchronous>, transform_indices = @transform_6, window_bounds = array<i64: 8, 8, 1>}, {transform_indices = @transform_7, window_bounds = array<i64: 8, 8, 128>}, {transform_indices = @transform_8, window_bounds = array<i64: 8, 8, 128>}]} {
    %c0 = arith.constant 0 : index
    %c0_0 = arith.constant 0 : index
    %0 = vector.load %arg3[%c0, %c0_0] : memref<32x16xf32, #tpu.memory_space<vmem>>, vector<32x16xf32>
    %c0_1 = arith.constant 0 : index
    %c0_2 = arith.constant 0 : index
    %1 = vector.load %arg4[%c0_1, %c0_2] : memref<32x1xf32, #tpu.memory_space<vmem>>, vector<32x1xf32>
    %c0_3 = arith.constant 0 : index
    %c0_4 = arith.constant 0 : index
    %2 = vector.load %arg5[%c0_3, %c0_4] : memref<8x32xf32, #tpu.memory_space<vmem>>, vector<8x32xf32>
    %c0_5 = arith.constant 0 : index
    %c0_6 = arith.constant 0 : index
    %3 = vector.load %arg6[%c0_5, %c0_6] : memref<8x1xf32, #tpu.memory_space<vmem>>, vector<8x1xf32>
    %c0_7 = arith.constant 0 : index
    %c0_8 = arith.constant 0 : index
    %c0_9 = arith.constant 0 : index
    %4 = vector.load %arg2[%c0_7, %c0_8, %c0_9] : memref<8x16x128xf32, #tpu.memory_space<vmem>>, vector<1x16x128xf32>
    %5 = vector.shape_cast %4 : vector<1x16x128xf32> to vector<16x128xf32>
    %cst = arith.constant dense<0.000000e+00> : vector<32x128xf32>
    %6 = tpu.matmul %0, %5, %cst {dimension_numbers = #tpu.dot_dimension_numbers<[1], [0], [0], [1], [0, 0, 1, 1], [], []>} : vector<32x16xf32>, vector<16x128xf32>, vector<32x128xf32> -> vector<32x128xf32>
    %7 = vector.broadcast %1 : vector<32x1xf32> to vector<32x128xf32>
    %8 = arith.addf %6, %7 : vector<32x128xf32>
    %cst_10 = arith.constant 0.000000e+00 : f32
    %9 = vector.broadcast %cst_10 : f32 to vector<32x128xf32>
    %10 = arith.maximumf %8, %9 : vector<32x128xf32>
    %cst_11 = arith.constant dense<0.000000e+00> : vector<8x128xf32>
    %11 = tpu.matmul %2, %10, %cst_11 {dimension_numbers = #tpu.dot_dimension_numbers<[1], [0], [0], [1], [0, 0, 1, 1], [], []>} : vector<8x32xf32>, vector<32x128xf32>, vector<8x128xf32> -> vector<8x128xf32>
    %12 = vector.broadcast %3 : vector<8x1xf32> to vector<8x128xf32>
    %13 = arith.addf %11, %12 : vector<8x128xf32>
    %c0_12 = arith.constant 0 : index
    %c0_13 = arith.constant 0 : index
    %c0_14 = arith.constant 0 : index
    %14 = vector.load %arg8[%c0_12, %c0_13, %c0_14] : memref<8x8x128xf32, #tpu.memory_space<vmem>>, vector<1x8x128xf32>
    %15 = vector.shape_cast %14 : vector<1x8x128xf32> to vector<8x128xf32>
    %16 = vector.shape_cast %13 : vector<8x128xf32> to vector<1x8x128xf32>
    tpu.vector_store %arg8[%c0_12, %c0_13, %c0_14], %16 {strides = array<i32>} : memref<8x8x128xf32, #tpu.memory_space<vmem>>, vector<1x8x128xf32>,
    %c1 = arith.constant 1 : index
    %c0_15 = arith.constant 0 : index
    %c0_16 = arith.constant 0 : index
    %17 = vector.load %arg2[%c1, %c0_15, %c0_16] : memref<8x16x128xf32, #tpu.memory_space<vmem>>, vector<1x16x128xf32>
    %18 = vector.shape_cast %17 : vector<1x16x128xf32> to vector<16x128xf32>
    %cst_17 = arith.constant dense<0.000000e+00> : vector<32x128xf32>
    %19 = tpu.matmul %0, %18, %cst_17 {dimension_numbers = #tpu.dot_dimension_numbers<[1], [0], [0], [1], [0, 0, 1, 1], [], []>} : vector<32x16xf32>, vector<16x128xf32>, vector<32x128xf32> -> vector<32x128xf32>
    %20 = vector.broadcast %1 : vector<32x1xf32> to vector<32x128xf32>
    %21 = arith.addf %19, %20 : vector<32x128xf32>
    %cst_18 = arith.constant 0.000000e+00 : f32
    %22 = vector.broadcast %cst_18 : f32 to vector<32x128xf32>
    %23 = arith.maximumf %21, %22 : vector<32x128xf32>
    %cst_19 = arith.constant dense<0.000000e+00> : vector<8x128xf32>
    %24 = tpu.matmul %2, %23, %cst_19 {dimension_numbers = #tpu.dot_dimension_numbers<[1], [0], [0], [1], [0, 0, 1, 1], [], []>} : vector<8x32xf32>, vector<32x128xf32>, vector<8x128xf32> -> vector<8x128xf32>
    %25 = vector.broadcast %3 : vector<8x1xf32> to vector<8x128xf32>
    %26 = arith.addf %24, %25 : vector<8x128xf32>
    %c1_20 = arith.constant 1 : index
    %c0_21 = arith.constant 0 : index
    %c0_22 = arith.constant 0 : index
    %27 = vector.load %arg8[%c1_20, %c0_21, %c0_22] : memref<8x8x128xf32, #tpu.memory_space<vmem>>, vector<1x8x128xf32>
    %28 = vector.shape_cast %27 : vector<1x8x128xf32> to vector<8x128xf32>
    %29 = vector.shape_cast %26 : vector<8x128xf32> to vector<1x8x128xf32>
    tpu.vector_store %arg8[%c1_20, %c0_21, %c0_22], %29 {strides = array<i32>} : memref<8x8x128xf32, #tpu.memory_space<vmem>>, vector<1x8x128xf32>,
    %c2 = arith.constant 2 : index
    %c0_23 = arith.constant 0 : index
    %c0_24 = arith.constant 0 : index
    %30 = vector.load %arg2[%c2, %c0_23, %c0_24] : memref<8x16x128xf32, #tpu.memory_space<vmem>>, vector<1x16x128xf32>
    %31 = vector.shape_cast %30 : vector<1x16x128xf32> to vector<16x128xf32>
    %cst_25 = arith.constant dense<0.000000e+00> : vector<32x128xf32>
    %32 = tpu.matmul %0, %31, %cst_25 {dimension_numbers = #tpu.dot_dimension_numbers<[1], [0], [0], [1], [0, 0, 1, 1], [], []>} : vector<32x16xf32>, vector<16x128xf32>, vector<32x128xf32> -> vector<32x128xf32>
    %33 = vector.broadcast %1 : vector<32x1xf32> to vector<32x128xf32>
    %34 = arith.addf %32, %33 : vector<32x128xf32>
    %cst_26 = arith.constant 0.000000e+00 : f32
    %35 = vector.broadcast %cst_26 : f32 to vector<32x128xf32>
    %36 = arith.maximumf %34, %35 : vector<32x128xf32>
    %cst_27 = arith.constant dense<0.000000e+00> : vector<8x128xf32>
    %37 = tpu.matmul %2, %36, %cst_27 {dimension_numbers = #tpu.dot_dimension_numbers<[1], [0], [0], [1], [0, 0, 1, 1], [], []>} : vector<8x32xf32>, vector<32x128xf32>, vector<8x128xf32> -> vector<8x128xf32>
    %38 = vector.broadcast %3 : vector<8x1xf32> to vector<8x128xf32>
    %39 = arith.addf %37, %38 : vector<8x128xf32>
    %c2_28 = arith.constant 2 : index
    %c0_29 = arith.constant 0 : index
    %c0_30 = arith.constant 0 : index
    %40 = vector.load %arg8[%c2_28, %c0_29, %c0_30] : memref<8x8x128xf32, #tpu.memory_space<vmem>>, vector<1x8x128xf32>
    %41 = vector.shape_cast %40 : vector<1x8x128xf32> to vector<8x128xf32>
    %42 = vector.shape_cast %39 : vector<8x128xf32> to vector<1x8x128xf32>
    tpu.vector_store %arg8[%c2_28, %c0_29, %c0_30], %42 {strides = array<i32>} : memref<8x8x128xf32, #tpu.memory_space<vmem>>, vector<1x8x128xf32>,
    %c3 = arith.constant 3 : index
    %c0_31 = arith.constant 0 : index
    %c0_32 = arith.constant 0 : index
    %43 = vector.load %arg2[%c3, %c0_31, %c0_32] : memref<8x16x128xf32, #tpu.memory_space<vmem>>, vector<1x16x128xf32>
    %44 = vector.shape_cast %43 : vector<1x16x128xf32> to vector<16x128xf32>
    %cst_33 = arith.constant dense<0.000000e+00> : vector<32x128xf32>
    %45 = tpu.matmul %0, %44, %cst_33 {dimension_numbers = #tpu.dot_dimension_numbers<[1], [0], [0], [1], [0, 0, 1, 1], [], []>} : vector<32x16xf32>, vector<16x128xf32>, vector<32x128xf32> -> vector<32x128xf32>
    %46 = vector.broadcast %1 : vector<32x1xf32> to vector<32x128xf32>
    %47 = arith.addf %45, %46 : vector<32x128xf32>
    %cst_34 = arith.constant 0.000000e+00 : f32
    %48 = vector.broadcast %cst_34 : f32 to vector<32x128xf32>
    %49 = arith.maximumf %47, %48 : vector<32x128xf32>
    %cst_35 = arith.constant dense<0.000000e+00> : vector<8x128xf32>
    %50 = tpu.matmul %2, %49, %cst_35 {dimension_numbers = #tpu.dot_dimension_numbers<[1], [0], [0], [1], [0, 0, 1, 1], [], []>} : vector<8x32xf32>, vector<32x128xf32>, vector<8x128xf32> -> vector<8x128xf32>
    %51 = vector.broadcast %3 : vector<8x1xf32> to vector<8x128xf32>
    %52 = arith.addf %50, %51 : vector<8x128xf32>
    %c3_36 = arith.constant 3 : index
    %c0_37 = arith.constant 0 : index
    %c0_38 = arith.constant 0 : index
    %53 = vector.load %arg8[%c3_36, %c0_37, %c0_38] : memref<8x8x128xf32, #tpu.memory_space<vmem>>, vector<1x8x128xf32>
    %54 = vector.shape_cast %53 : vector<1x8x128xf32> to vector<8x128xf32>
    %55 = vector.shape_cast %52 : vector<8x128xf32> to vector<1x8x128xf32>
    tpu.vector_store %arg8[%c3_36, %c0_37, %c0_38], %55 {strides = array<i32>} : memref<8x8x128xf32, #tpu.memory_space<vmem>>, vector<1x8x128xf32>,
    %c4 = arith.constant 4 : index
    %c0_39 = arith.constant 0 : index
    %c0_40 = arith.constant 0 : index
    %56 = vector.load %arg2[%c4, %c0_39, %c0_40] : memref<8x16x128xf32, #tpu.memory_space<vmem>>, vector<1x16x128xf32>
    %57 = vector.shape_cast %56 : vector<1x16x128xf32> to vector<16x128xf32>
    %cst_41 = arith.constant dense<0.000000e+00> : vector<32x128xf32>
    %58 = tpu.matmul %0, %57, %cst_41 {dimension_numbers = #tpu.dot_dimension_numbers<[1], [0], [0], [1], [0, 0, 1, 1], [], []>} : vector<32x16xf32>, vector<16x128xf32>, vector<32x128xf32> -> vector<32x128xf32>
    %59 = vector.broadcast %1 : vector<32x1xf32> to vector<32x128xf32>
    %60 = arith.addf %58, %59 : vector<32x128xf32>
    %cst_42 = arith.constant 0.000000e+00 : f32
    %61 = vector.broadcast %cst_42 : f32 to vector<32x128xf32>
    %62 = arith.maximumf %60, %61 : vector<32x128xf32>
    %cst_43 = arith.constant dense<0.000000e+00> : vector<8x128xf32>
    %63 = tpu.matmul %2, %62, %cst_43 {dimension_numbers = #tpu.dot_dimension_numbers<[1], [0], [0], [1], [0, 0, 1, 1], [], []>} : vector<8x32xf32>, vector<32x128xf32>, vector<8x128xf32> -> vector<8x128xf32>
    %64 = vector.broadcast %3 : vector<8x1xf32> to vector<8x128xf32>
    %65 = arith.addf %63, %64 : vector<8x128xf32>
    %c4_44 = arith.constant 4 : index
    %c0_45 = arith.constant 0 : index
    %c0_46 = arith.constant 0 : index
    %66 = vector.load %arg8[%c4_44, %c0_45, %c0_46] : memref<8x8x128xf32, #tpu.memory_space<vmem>>, vector<1x8x128xf32>
    %67 = vector.shape_cast %66 : vector<1x8x128xf32> to vector<8x128xf32>
    %68 = vector.shape_cast %65 : vector<8x128xf32> to vector<1x8x128xf32>
    tpu.vector_store %arg8[%c4_44, %c0_45, %c0_46], %68 {strides = array<i32>} : memref<8x8x128xf32, #tpu.memory_space<vmem>>, vector<1x8x128xf32>,
    %c5 = arith.constant 5 : index
    %c0_47 = arith.constant 0 : index
    %c0_48 = arith.constant 0 : index
    %69 = vector.load %arg2[%c5, %c0_47, %c0_48] : memref<8x16x128xf32, #tpu.memory_space<vmem>>, vector<1x16x128xf32>
    %70 = vector.shape_cast %69 : vector<1x16x128xf32> to vector<16x128xf32>
    %cst_49 = arith.constant dense<0.000000e+00> : vector<32x128xf32>
    %71 = tpu.matmul %0, %70, %cst_49 {dimension_numbers = #tpu.dot_dimension_numbers<[1], [0], [0], [1], [0, 0, 1, 1], [], []>} : vector<32x16xf32>, vector<16x128xf32>, vector<32x128xf32> -> vector<32x128xf32>
    %72 = vector.broadcast %1 : vector<32x1xf32> to vector<32x128xf32>
    %73 = arith.addf %71, %72 : vector<32x128xf32>
    %cst_50 = arith.constant 0.000000e+00 : f32
    %74 = vector.broadcast %cst_50 : f32 to vector<32x128xf32>
    %75 = arith.maximumf %73, %74 : vector<32x128xf32>
    %cst_51 = arith.constant dense<0.000000e+00> : vector<8x128xf32>
    %76 = tpu.matmul %2, %75, %cst_51 {dimension_numbers = #tpu.dot_dimension_numbers<[1], [0], [0], [1], [0, 0, 1, 1], [], []>} : vector<8x32xf32>, vector<32x128xf32>, vector<8x128xf32> -> vector<8x128xf32>
    %77 = vector.broadcast %3 : vector<8x1xf32> to vector<8x128xf32>
    %78 = arith.addf %76, %77 : vector<8x128xf32>
    %c5_52 = arith.constant 5 : index
    %c0_53 = arith.constant 0 : index
    %c0_54 = arith.constant 0 : index
    %79 = vector.load %arg8[%c5_52, %c0_53, %c0_54] : memref<8x8x128xf32, #tpu.memory_space<vmem>>, vector<1x8x128xf32>
    %80 = vector.shape_cast %79 : vector<1x8x128xf32> to vector<8x128xf32>
    %81 = vector.shape_cast %78 : vector<8x128xf32> to vector<1x8x128xf32>
    tpu.vector_store %arg8[%c5_52, %c0_53, %c0_54], %81 {strides = array<i32>} : memref<8x8x128xf32, #tpu.memory_space<vmem>>, vector<1x8x128xf32>,
    %c6 = arith.constant 6 : index
    %c0_55 = arith.constant 0 : index
    %c0_56 = arith.constant 0 : index
    %82 = vector.load %arg2[%c6, %c0_55, %c0_56] : memref<8x16x128xf32, #tpu.memory_space<vmem>>, vector<1x16x128xf32>
    %83 = vector.shape_cast %82 : vector<1x16x128xf32> to vector<16x128xf32>
    %cst_57 = arith.constant dense<0.000000e+00> : vector<32x128xf32>
    %84 = tpu.matmul %0, %83, %cst_57 {dimension_numbers = #tpu.dot_dimension_numbers<[1], [0], [0], [1], [0, 0, 1, 1], [], []>} : vector<32x16xf32>, vector<16x128xf32>, vector<32x128xf32> -> vector<32x128xf32>
    %85 = vector.broadcast %1 : vector<32x1xf32> to vector<32x128xf32>
    %86 = arith.addf %84, %85 : vector<32x128xf32>
    %cst_58 = arith.constant 0.000000e+00 : f32
    %87 = vector.broadcast %cst_58 : f32 to vector<32x128xf32>
    %88 = arith.maximumf %86, %87 : vector<32x128xf32>
    %cst_59 = arith.constant dense<0.000000e+00> : vector<8x128xf32>
    %89 = tpu.matmul %2, %88, %cst_59 {dimension_numbers = #tpu.dot_dimension_numbers<[1], [0], [0], [1], [0, 0, 1, 1], [], []>} : vector<8x32xf32>, vector<32x128xf32>, vector<8x128xf32> -> vector<8x128xf32>
    %90 = vector.broadcast %3 : vector<8x1xf32> to vector<8x128xf32>
    %91 = arith.addf %89, %90 : vector<8x128xf32>
    %c6_60 = arith.constant 6 : index
    %c0_61 = arith.constant 0 : index
    %c0_62 = arith.constant 0 : index
    %92 = vector.load %arg8[%c6_60, %c0_61, %c0_62] : memref<8x8x128xf32, #tpu.memory_space<vmem>>, vector<1x8x128xf32>
    %93 = vector.shape_cast %92 : vector<1x8x128xf32> to vector<8x128xf32>
    %94 = vector.shape_cast %91 : vector<8x128xf32> to vector<1x8x128xf32>
    tpu.vector_store %arg8[%c6_60, %c0_61, %c0_62], %94 {strides = array<i32>} : memref<8x8x128xf32, #tpu.memory_space<vmem>>, vector<1x8x128xf32>,
    %c7 = arith.constant 7 : index
    %c0_63 = arith.constant 0 : index
    %c0_64 = arith.constant 0 : index
    %95 = vector.load %arg2[%c7, %c0_63, %c0_64] : memref<8x16x128xf32, #tpu.memory_space<vmem>>, vector<1x16x128xf32>
    %96 = vector.shape_cast %95 : vector<1x16x128xf32> to vector<16x128xf32>
    %cst_65 = arith.constant dense<0.000000e+00> : vector<32x128xf32>
    %97 = tpu.matmul %0, %96, %cst_65 {dimension_numbers = #tpu.dot_dimension_numbers<[1], [0], [0], [1], [0, 0, 1, 1], [], []>} : vector<32x16xf32>, vector<16x128xf32>, vector<32x128xf32> -> vector<32x128xf32>
    %98 = vector.broadcast %1 : vector<32x1xf32> to vector<32x128xf32>
    %99 = arith.addf %97, %98 : vector<32x128xf32>
    %cst_66 = arith.constant 0.000000e+00 : f32
    %100 = vector.broadcast %cst_66 : f32 to vector<32x128xf32>
    %101 = arith.maximumf %99, %100 : vector<32x128xf32>
    %cst_67 = arith.constant dense<0.000000e+00> : vector<8x128xf32>
    %102 = tpu.matmul %2, %101, %cst_67 {dimension_numbers = #tpu.dot_dimension_numbers<[1], [0], [0], [1], [0, 0, 1, 1], [], []>} : vector<8x32xf32>, vector<32x128xf32>, vector<8x128xf32> -> vector<8x128xf32>
    %103 = vector.broadcast %3 : vector<8x1xf32> to vector<8x128xf32>
    %104 = arith.addf %102, %103 : vector<8x128xf32>
    %c7_68 = arith.constant 7 : index
    %c0_69 = arith.constant 0 : index
    %c0_70 = arith.constant 0 : index
    %105 = vector.load %arg8[%c7_68, %c0_69, %c0_70] : memref<8x8x128xf32, #tpu.memory_space<vmem>>, vector<1x8x128xf32>
    %106 = vector.shape_cast %105 : vector<1x8x128xf32> to vector<8x128xf32>
    %107 = vector.shape_cast %104 : vector<8x128xf32> to vector<1x8x128xf32>
    tpu.vector_store %arg8[%c7_68, %c0_69, %c0_70], %107 {strides = array<i32>} : memref<8x8x128xf32, #tpu.memory_space<vmem>>, vector<1x8x128xf32>,
    %c0_71 = arith.constant 0 : index
    %c0_72 = arith.constant 0 : index
    %c0_73 = arith.constant 0 : index
    %108 = vector.load %arg7[%c0_71, %c0_72, %c0_73] : memref<8x8x1xf32, #tpu.memory_space<vmem>>, vector<1x8x1xf32>
    %109 = vector.shape_cast %108 : vector<1x8x1xf32> to vector<8x1xf32>
    %c0_74 = arith.constant 0 : index
    %c0_75 = arith.constant 0 : index
    %110 = memref.load %arg1[%c0_74, %c0_75] : memref<8x8xf32, #tpu.memory_space<smem>>
    %c0_76 = arith.constant 0 : index
    %c0_77 = arith.constant 0 : index
    %c0_78 = arith.constant 0 : index
    %111 = vector.load %arg8[%c0_76, %c0_77, %c0_78] : memref<8x8x128xf32, #tpu.memory_space<vmem>>, vector<1x8x128xf32>
    %112 = vector.shape_cast %111 : vector<1x8x128xf32> to vector<8x128xf32>
    %113 = vector.broadcast %110 : f32 to vector<8x128xf32>
    %114 = arith.mulf %113, %112 : vector<8x128xf32>
    %115 = vector.broadcast %109 : vector<8x1xf32> to vector<8x128xf32>
    %116 = arith.addf %115, %114 : vector<8x128xf32>
    %c0_79 = arith.constant 0 : index
    %c1_80 = arith.constant 1 : index
    %117 = memref.load %arg1[%c0_79, %c1_80] : memref<8x8xf32, #tpu.memory_space<smem>>
    %c1_81 = arith.constant 1 : index
    %c0_82 = arith.constant 0 : index
    %c0_83 = arith.constant 0 : index
    %118 = vector.load %arg8[%c1_81, %c0_82, %c0_83] : memref<8x8x128xf32, #tpu.memory_space<vmem>>, vector<1x8x128xf32>
    %119 = vector.shape_cast %118 : vector<1x8x128xf32> to vector<8x128xf32>
    %120 = vector.broadcast %117 : f32 to vector<8x128xf32>
    %121 = arith.mulf %120, %119 : vector<8x128xf32>
    %122 = arith.addf %116, %121 : vector<8x128xf32>
    %c0_84 = arith.constant 0 : index
    %c2_85 = arith.constant 2 : index
    %123 = memref.load %arg1[%c0_84, %c2_85] : memref<8x8xf32, #tpu.memory_space<smem>>
    %c2_86 = arith.constant 2 : index
    %c0_87 = arith.constant 0 : index
    %c0_88 = arith.constant 0 : index
    %124 = vector.load %arg8[%c2_86, %c0_87, %c0_88] : memref<8x8x128xf32, #tpu.memory_space<vmem>>, vector<1x8x128xf32>
    %125 = vector.shape_cast %124 : vector<1x8x128xf32> to vector<8x128xf32>
    %126 = vector.broadcast %123 : f32 to vector<8x128xf32>
    %127 = arith.mulf %126, %125 : vector<8x128xf32>
    %128 = arith.addf %122, %127 : vector<8x128xf32>
    %c0_89 = arith.constant 0 : index
    %c3_90 = arith.constant 3 : index
    %129 = memref.load %arg1[%c0_89, %c3_90] : memref<8x8xf32, #tpu.memory_space<smem>>
    %c3_91 = arith.constant 3 : index
    %c0_92 = arith.constant 0 : index
    %c0_93 = arith.constant 0 : index
    %130 = vector.load %arg8[%c3_91, %c0_92, %c0_93] : memref<8x8x128xf32, #tpu.memory_space<vmem>>, vector<1x8x128xf32>
    %131 = vector.shape_cast %130 : vector<1x8x128xf32> to vector<8x128xf32>
    %132 = vector.broadcast %129 : f32 to vector<8x128xf32>
    %133 = arith.mulf %132, %131 : vector<8x128xf32>
    %134 = arith.addf %128, %133 : vector<8x128xf32>
    %c0_94 = arith.constant 0 : index
    %c4_95 = arith.constant 4 : index
    %135 = memref.load %arg1[%c0_94, %c4_95] : memref<8x8xf32, #tpu.memory_space<smem>>
    %c4_96 = arith.constant 4 : index
    %c0_97 = arith.constant 0 : index
    %c0_98 = arith.constant 0 : index
    %136 = vector.load %arg8[%c4_96, %c0_97, %c0_98] : memref<8x8x128xf32, #tpu.memory_space<vmem>>, vector<1x8x128xf32>
    %137 = vector.shape_cast %136 : vector<1x8x128xf32> to vector<8x128xf32>
    %138 = vector.broadcast %135 : f32 to vector<8x128xf32>
    %139 = arith.mulf %138, %137 : vector<8x128xf32>
    %140 = arith.addf %134, %139 : vector<8x128xf32>
    %c0_99 = arith.constant 0 : index
    %c5_100 = arith.constant 5 : index
    %141 = memref.load %arg1[%c0_99, %c5_100] : memref<8x8xf32, #tpu.memory_space<smem>>
    %c5_101 = arith.constant 5 : index
    %c0_102 = arith.constant 0 : index
    %c0_103 = arith.constant 0 : index
    %142 = vector.load %arg8[%c5_101, %c0_102, %c0_103] : memref<8x8x128xf32, #tpu.memory_space<vmem>>, vector<1x8x128xf32>
    %143 = vector.shape_cast %142 : vector<1x8x128xf32> to vector<8x128xf32>
    %144 = vector.broadcast %141 : f32 to vector<8x128xf32>
    %145 = arith.mulf %144, %143 : vector<8x128xf32>
    %146 = arith.addf %140, %145 : vector<8x128xf32>
    %c0_104 = arith.constant 0 : index
    %c6_105 = arith.constant 6 : index
    %147 = memref.load %arg1[%c0_104, %c6_105] : memref<8x8xf32, #tpu.memory_space<smem>>
    %c6_106 = arith.constant 6 : index
    %c0_107 = arith.constant 0 : index
    %c0_108 = arith.constant 0 : index
    %148 = vector.load %arg8[%c6_106, %c0_107, %c0_108] : memref<8x8x128xf32, #tpu.memory_space<vmem>>, vector<1x8x128xf32>
    %149 = vector.shape_cast %148 : vector<1x8x128xf32> to vector<8x128xf32>
    %150 = vector.broadcast %147 : f32 to vector<8x128xf32>
    %151 = arith.mulf %150, %149 : vector<8x128xf32>
    %152 = arith.addf %146, %151 : vector<8x128xf32>
    %c0_109 = arith.constant 0 : index
    %c7_110 = arith.constant 7 : index
    %153 = memref.load %arg1[%c0_109, %c7_110] : memref<8x8xf32, #tpu.memory_space<smem>>
    %c7_111 = arith.constant 7 : index
    %c0_112 = arith.constant 0 : index
    %c0_113 = arith.constant 0 : index
    %154 = vector.load %arg8[%c7_111, %c0_112, %c0_113] : memref<8x8x128xf32, #tpu.memory_space<vmem>>, vector<1x8x128xf32>
    %155 = vector.shape_cast %154 : vector<1x8x128xf32> to vector<8x128xf32>
    %156 = vector.broadcast %153 : f32 to vector<8x128xf32>
    %157 = arith.mulf %156, %155 : vector<8x128xf32>
    %158 = arith.addf %152, %157 : vector<8x128xf32>
    %c0_114 = arith.constant 0 : index
    %c0_115 = arith.constant 0 : index
    %c0_116 = arith.constant 0 : index
    %159 = vector.load %arg9[%c0_114, %c0_115, %c0_116] : memref<8x8x128xf32, #tpu.memory_space<vmem>>, vector<1x8x128xf32>
    %160 = vector.shape_cast %159 : vector<1x8x128xf32> to vector<8x128xf32>
    %161 = vector.shape_cast %158 : vector<8x128xf32> to vector<1x8x128xf32>
    tpu.vector_store %arg9[%c0_114, %c0_115, %c0_116], %161 {strides = array<i32>} : memref<8x8x128xf32, #tpu.memory_space<vmem>>, vector<1x8x128xf32>,
    %c1_117 = arith.constant 1 : index
    %c0_118 = arith.constant 0 : index
    %c0_119 = arith.constant 0 : index
    %162 = vector.load %arg7[%c1_117, %c0_118, %c0_119] : memref<8x8x1xf32, #tpu.memory_space<vmem>>, vector<1x8x1xf32>
    %163 = vector.shape_cast %162 : vector<1x8x1xf32> to vector<8x1xf32>
    %c1_120 = arith.constant 1 : index
    %c0_121 = arith.constant 0 : index
    %164 = memref.load %arg1[%c1_120, %c0_121] : memref<8x8xf32, #tpu.memory_space<smem>>
    %c0_122 = arith.constant 0 : index
    %c0_123 = arith.constant 0 : index
    %c0_124 = arith.constant 0 : index
    %165 = vector.load %arg8[%c0_122, %c0_123, %c0_124] : memref<8x8x128xf32, #tpu.memory_space<vmem>>, vector<1x8x128xf32>
    %166 = vector.shape_cast %165 : vector<1x8x128xf32> to vector<8x128xf32>
    %167 = vector.broadcast %164 : f32 to vector<8x128xf32>
    %168 = arith.mulf %167, %166 : vector<8x128xf32>
    %169 = vector.broadcast %163 : vector<8x1xf32> to vector<8x128xf32>
    %170 = arith.addf %169, %168 : vector<8x128xf32>
    %c1_125 = arith.constant 1 : index
    %c1_126 = arith.constant 1 : index
    %171 = memref.load %arg1[%c1_125, %c1_126] : memref<8x8xf32, #tpu.memory_space<smem>>
    %c1_127 = arith.constant 1 : index
    %c0_128 = arith.constant 0 : index
    %c0_129 = arith.constant 0 : index
    %172 = vector.load %arg8[%c1_127, %c0_128, %c0_129] : memref<8x8x128xf32, #tpu.memory_space<vmem>>, vector<1x8x128xf32>
    %173 = vector.shape_cast %172 : vector<1x8x128xf32> to vector<8x128xf32>
    %174 = vector.broadcast %171 : f32 to vector<8x128xf32>
    %175 = arith.mulf %174, %173 : vector<8x128xf32>
    %176 = arith.addf %170, %175 : vector<8x128xf32>
    %c1_130 = arith.constant 1 : index
    %c2_131 = arith.constant 2 : index
    %177 = memref.load %arg1[%c1_130, %c2_131] : memref<8x8xf32, #tpu.memory_space<smem>>
    %c2_132 = arith.constant 2 : index
    %c0_133 = arith.constant 0 : index
    %c0_134 = arith.constant 0 : index
    %178 = vector.load %arg8[%c2_132, %c0_133, %c0_134] : memref<8x8x128xf32, #tpu.memory_space<vmem>>, vector<1x8x128xf32>
    %179 = vector.shape_cast %178 : vector<1x8x128xf32> to vector<8x128xf32>
    %180 = vector.broadcast %177 : f32 to vector<8x128xf32>
    %181 = arith.mulf %180, %179 : vector<8x128xf32>
    %182 = arith.addf %176, %181 : vector<8x128xf32>
    %c1_135 = arith.constant 1 : index
    %c3_136 = arith.constant 3 : index
    %183 = memref.load %arg1[%c1_135, %c3_136] : memref<8x8xf32, #tpu.memory_space<smem>>
    %c3_137 = arith.constant 3 : index
    %c0_138 = arith.constant 0 : index
    %c0_139 = arith.constant 0 : index
    %184 = vector.load %arg8[%c3_137, %c0_138, %c0_139] : memref<8x8x128xf32, #tpu.memory_space<vmem>>, vector<1x8x128xf32>
    %185 = vector.shape_cast %184 : vector<1x8x128xf32> to vector<8x128xf32>
    %186 = vector.broadcast %183 : f32 to vector<8x128xf32>
    %187 = arith.mulf %186, %185 : vector<8x128xf32>
    %188 = arith.addf %182, %187 : vector<8x128xf32>
    %c1_140 = arith.constant 1 : index
    %c4_141 = arith.constant 4 : index
    %189 = memref.load %arg1[%c1_140, %c4_141] : memref<8x8xf32, #tpu.memory_space<smem>>
    %c4_142 = arith.constant 4 : index
    %c0_143 = arith.constant 0 : index
    %c0_144 = arith.constant 0 : index
    %190 = vector.load %arg8[%c4_142, %c0_143, %c0_144] : memref<8x8x128xf32, #tpu.memory_space<vmem>>, vector<1x8x128xf32>
    %191 = vector.shape_cast %190 : vector<1x8x128xf32> to vector<8x128xf32>
    %192 = vector.broadcast %189 : f32 to vector<8x128xf32>
    %193 = arith.mulf %192, %191 : vector<8x128xf32>
    %194 = arith.addf %188, %193 : vector<8x128xf32>
    %c1_145 = arith.constant 1 : index
    %c5_146 = arith.constant 5 : index
    %195 = memref.load %arg1[%c1_145, %c5_146] : memref<8x8xf32, #tpu.memory_space<smem>>
    %c5_147 = arith.constant 5 : index
    %c0_148 = arith.constant 0 : index
    %c0_149 = arith.constant 0 : index
    %196 = vector.load %arg8[%c5_147, %c0_148, %c0_149] : memref<8x8x128xf32, #tpu.memory_space<vmem>>, vector<1x8x128xf32>
    %197 = vector.shape_cast %196 : vector<1x8x128xf32> to vector<8x128xf32>
    %198 = vector.broadcast %195 : f32 to vector<8x128xf32>
    %199 = arith.mulf %198, %197 : vector<8x128xf32>
    %200 = arith.addf %194, %199 : vector<8x128xf32>
    %c1_150 = arith.constant 1 : index
    %c6_151 = arith.constant 6 : index
    %201 = memref.load %arg1[%c1_150, %c6_151] : memref<8x8xf32, #tpu.memory_space<smem>>
    %c6_152 = arith.constant 6 : index
    %c0_153 = arith.constant 0 : index
    %c0_154 = arith.constant 0 : index
    %202 = vector.load %arg8[%c6_152, %c0_153, %c0_154] : memref<8x8x128xf32, #tpu.memory_space<vmem>>, vector<1x8x128xf32>
    %203 = vector.shape_cast %202 : vector<1x8x128xf32> to vector<8x128xf32>
    %204 = vector.broadcast %201 : f32 to vector<8x128xf32>
    %205 = arith.mulf %204, %203 : vector<8x128xf32>
    %206 = arith.addf %200, %205 : vector<8x128xf32>
    %c1_155 = arith.constant 1 : index
    %c7_156 = arith.constant 7 : index
    %207 = memref.load %arg1[%c1_155, %c7_156] : memref<8x8xf32, #tpu.memory_space<smem>>
    %c7_157 = arith.constant 7 : index
    %c0_158 = arith.constant 0 : index
    %c0_159 = arith.constant 0 : index
    %208 = vector.load %arg8[%c7_157, %c0_158, %c0_159] : memref<8x8x128xf32, #tpu.memory_space<vmem>>, vector<1x8x128xf32>
    %209 = vector.shape_cast %208 : vector<1x8x128xf32> to vector<8x128xf32>
    %210 = vector.broadcast %207 : f32 to vector<8x128xf32>
    %211 = arith.mulf %210, %209 : vector<8x128xf32>
    %212 = arith.addf %206, %211 : vector<8x128xf32>
    %c1_160 = arith.constant 1 : index
    %c0_161 = arith.constant 0 : index
    %c0_162 = arith.constant 0 : index
    %213 = vector.load %arg9[%c1_160, %c0_161, %c0_162] : memref<8x8x128xf32, #tpu.memory_space<vmem>>, vector<1x8x128xf32>
    %214 = vector.shape_cast %213 : vector<1x8x128xf32> to vector<8x128xf32>
    %215 = vector.shape_cast %212 : vector<8x128xf32> to vector<1x8x128xf32>
    tpu.vector_store %arg9[%c1_160, %c0_161, %c0_162], %215 {strides = array<i32>} : memref<8x8x128xf32, #tpu.memory_space<vmem>>, vector<1x8x128xf32>,
    %c2_163 = arith.constant 2 : index
    %c0_164 = arith.constant 0 : index
    %c0_165 = arith.constant 0 : index
    %216 = vector.load %arg7[%c2_163, %c0_164, %c0_165] : memref<8x8x1xf32, #tpu.memory_space<vmem>>, vector<1x8x1xf32>
    %217 = vector.shape_cast %216 : vector<1x8x1xf32> to vector<8x1xf32>
    %c2_166 = arith.constant 2 : index
    %c0_167 = arith.constant 0 : index
    %218 = memref.load %arg1[%c2_166, %c0_167] : memref<8x8xf32, #tpu.memory_space<smem>>
    %c0_168 = arith.constant 0 : index
    %c0_169 = arith.constant 0 : index
    %c0_170 = arith.constant 0 : index
    %219 = vector.load %arg8[%c0_168, %c0_169, %c0_170] : memref<8x8x128xf32, #tpu.memory_space<vmem>>, vector<1x8x128xf32>
    %220 = vector.shape_cast %219 : vector<1x8x128xf32> to vector<8x128xf32>
    %221 = vector.broadcast %218 : f32 to vector<8x128xf32>
    %222 = arith.mulf %221, %220 : vector<8x128xf32>
    %223 = vector.broadcast %217 : vector<8x1xf32> to vector<8x128xf32>
    %224 = arith.addf %223, %222 : vector<8x128xf32>
    %c2_171 = arith.constant 2 : index
    %c1_172 = arith.constant 1 : index
    %225 = memref.load %arg1[%c2_171, %c1_172] : memref<8x8xf32, #tpu.memory_space<smem>>
    %c1_173 = arith.constant 1 : index
    %c0_174 = arith.constant 0 : index
    %c0_175 = arith.constant 0 : index
    %226 = vector.load %arg8[%c1_173, %c0_174, %c0_175] : memref<8x8x128xf32, #tpu.memory_space<vmem>>, vector<1x8x128xf32>
    %227 = vector.shape_cast %226 : vector<1x8x128xf32> to vector<8x128xf32>
    %228 = vector.broadcast %225 : f32 to vector<8x128xf32>
    %229 = arith.mulf %228, %227 : vector<8x128xf32>
    %230 = arith.addf %224, %229 : vector<8x128xf32>
    %c2_176 = arith.constant 2 : index
    %c2_177 = arith.constant 2 : index
    %231 = memref.load %arg1[%c2_176, %c2_177] : memref<8x8xf32, #tpu.memory_space<smem>>
    %c2_178 = arith.constant 2 : index
    %c0_179 = arith.constant 0 : index
    %c0_180 = arith.constant 0 : index
    %232 = vector.load %arg8[%c2_178, %c0_179, %c0_180] : memref<8x8x128xf32, #tpu.memory_space<vmem>>, vector<1x8x128xf32>
    %233 = vector.shape_cast %232 : vector<1x8x128xf32> to vector<8x128xf32>
    %234 = vector.broadcast %231 : f32 to vector<8x128xf32>
    %235 = arith.mulf %234, %233 : vector<8x128xf32>
    %236 = arith.addf %230, %235 : vector<8x128xf32>
    %c2_181 = arith.constant 2 : index
    %c3_182 = arith.constant 3 : index
    %237 = memref.load %arg1[%c2_181, %c3_182] : memref<8x8xf32, #tpu.memory_space<smem>>
    %c3_183 = arith.constant 3 : index
    %c0_184 = arith.constant 0 : index
    %c0_185 = arith.constant 0 : index
    %238 = vector.load %arg8[%c3_183, %c0_184, %c0_185] : memref<8x8x128xf32, #tpu.memory_space<vmem>>, vector<1x8x128xf32>
    %239 = vector.shape_cast %238 : vector<1x8x128xf32> to vector<8x128xf32>
    %240 = vector.broadcast %237 : f32 to vector<8x128xf32>
    %241 = arith.mulf %240, %239 : vector<8x128xf32>
    %242 = arith.addf %236, %241 : vector<8x128xf32>
    %c2_186 = arith.constant 2 : index
    %c4_187 = arith.constant 4 : index
    %243 = memref.load %arg1[%c2_186, %c4_187] : memref<8x8xf32, #tpu.memory_space<smem>>
    %c4_188 = arith.constant 4 : index
    %c0_189 = arith.constant 0 : index
    %c0_190 = arith.constant 0 : index
    %244 = vector.load %arg8[%c4_188, %c0_189, %c0_190] : memref<8x8x128xf32, #tpu.memory_space<vmem>>, vector<1x8x128xf32>
    %245 = vector.shape_cast %244 : vector<1x8x128xf32> to vector<8x128xf32>
    %246 = vector.broadcast %243 : f32 to vector<8x128xf32>
    %247 = arith.mulf %246, %245 : vector<8x128xf32>
    %248 = arith.addf %242, %247 : vector<8x128xf32>
    %c2_191 = arith.constant 2 : index
    %c5_192 = arith.constant 5 : index
    %249 = memref.load %arg1[%c2_191, %c5_192] : memref<8x8xf32, #tpu.memory_space<smem>>
    %c5_193 = arith.constant 5 : index
    %c0_194 = arith.constant 0 : index
    %c0_195 = arith.constant 0 : index
    %250 = vector.load %arg8[%c5_193, %c0_194, %c0_195] : memref<8x8x128xf32, #tpu.memory_space<vmem>>, vector<1x8x128xf32>
    %251 = vector.shape_cast %250 : vector<1x8x128xf32> to vector<8x128xf32>
    %252 = vector.broadcast %249 : f32 to vector<8x128xf32>
    %253 = arith.mulf %252, %251 : vector<8x128xf32>
    %254 = arith.addf %248, %253 : vector<8x128xf32>
    %c2_196 = arith.constant 2 : index
    %c6_197 = arith.constant 6 : index
    %255 = memref.load %arg1[%c2_196, %c6_197] : memref<8x8xf32, #tpu.memory_space<smem>>
    %c6_198 = arith.constant 6 : index
    %c0_199 = arith.constant 0 : index
    %c0_200 = arith.constant 0 : index
    %256 = vector.load %arg8[%c6_198, %c0_199, %c0_200] : memref<8x8x128xf32, #tpu.memory_space<vmem>>, vector<1x8x128xf32>
    %257 = vector.shape_cast %256 : vector<1x8x128xf32> to vector<8x128xf32>
    %258 = vector.broadcast %255 : f32 to vector<8x128xf32>
    %259 = arith.mulf %258, %257 : vector<8x128xf32>
    %260 = arith.addf %254, %259 : vector<8x128xf32>
    %c2_201 = arith.constant 2 : index
    %c7_202 = arith.constant 7 : index
    %261 = memref.load %arg1[%c2_201, %c7_202] : memref<8x8xf32, #tpu.memory_space<smem>>
    %c7_203 = arith.constant 7 : index
    %c0_204 = arith.constant 0 : index
    %c0_205 = arith.constant 0 : index
    %262 = vector.load %arg8[%c7_203, %c0_204, %c0_205] : memref<8x8x128xf32, #tpu.memory_space<vmem>>, vector<1x8x128xf32>
    %263 = vector.shape_cast %262 : vector<1x8x128xf32> to vector<8x128xf32>
    %264 = vector.broadcast %261 : f32 to vector<8x128xf32>
    %265 = arith.mulf %264, %263 : vector<8x128xf32>
    %266 = arith.addf %260, %265 : vector<8x128xf32>
    %c2_206 = arith.constant 2 : index
    %c0_207 = arith.constant 0 : index
    %c0_208 = arith.constant 0 : index
    %267 = vector.load %arg9[%c2_206, %c0_207, %c0_208] : memref<8x8x128xf32, #tpu.memory_space<vmem>>, vector<1x8x128xf32>
    %268 = vector.shape_cast %267 : vector<1x8x128xf32> to vector<8x128xf32>
    %269 = vector.shape_cast %266 : vector<8x128xf32> to vector<1x8x128xf32>
    tpu.vector_store %arg9[%c2_206, %c0_207, %c0_208], %269 {strides = array<i32>} : memref<8x8x128xf32, #tpu.memory_space<vmem>>, vector<1x8x128xf32>,
    %c3_209 = arith.constant 3 : index
    %c0_210 = arith.constant 0 : index
    %c0_211 = arith.constant 0 : index
    %270 = vector.load %arg7[%c3_209, %c0_210, %c0_211] : memref<8x8x1xf32, #tpu.memory_space<vmem>>, vector<1x8x1xf32>
    %271 = vector.shape_cast %270 : vector<1x8x1xf32> to vector<8x1xf32>
    %c3_212 = arith.constant 3 : index
    %c0_213 = arith.constant 0 : index
    %272 = memref.load %arg1[%c3_212, %c0_213] : memref<8x8xf32, #tpu.memory_space<smem>>
    %c0_214 = arith.constant 0 : index
    %c0_215 = arith.constant 0 : index
    %c0_216 = arith.constant 0 : index
    %273 = vector.load %arg8[%c0_214, %c0_215, %c0_216] : memref<8x8x128xf32, #tpu.memory_space<vmem>>, vector<1x8x128xf32>
    %274 = vector.shape_cast %273 : vector<1x8x128xf32> to vector<8x128xf32>
    %275 = vector.broadcast %272 : f32 to vector<8x128xf32>
    %276 = arith.mulf %275, %274 : vector<8x128xf32>
    %277 = vector.broadcast %271 : vector<8x1xf32> to vector<8x128xf32>
    %278 = arith.addf %277, %276 : vector<8x128xf32>
    %c3_217 = arith.constant 3 : index
    %c1_218 = arith.constant 1 : index
    %279 = memref.load %arg1[%c3_217, %c1_218] : memref<8x8xf32, #tpu.memory_space<smem>>
    %c1_219 = arith.constant 1 : index
    %c0_220 = arith.constant 0 : index
    %c0_221 = arith.constant 0 : index
    %280 = vector.load %arg8[%c1_219, %c0_220, %c0_221] : memref<8x8x128xf32, #tpu.memory_space<vmem>>, vector<1x8x128xf32>
    %281 = vector.shape_cast %280 : vector<1x8x128xf32> to vector<8x128xf32>
    %282 = vector.broadcast %279 : f32 to vector<8x128xf32>
    %283 = arith.mulf %282, %281 : vector<8x128xf32>
    %284 = arith.addf %278, %283 : vector<8x128xf32>
    %c3_222 = arith.constant 3 : index
    %c2_223 = arith.constant 2 : index
    %285 = memref.load %arg1[%c3_222, %c2_223] : memref<8x8xf32, #tpu.memory_space<smem>>
    %c2_224 = arith.constant 2 : index
    %c0_225 = arith.constant 0 : index
    %c0_226 = arith.constant 0 : index
    %286 = vector.load %arg8[%c2_224, %c0_225, %c0_226] : memref<8x8x128xf32, #tpu.memory_space<vmem>>, vector<1x8x128xf32>
    %287 = vector.shape_cast %286 : vector<1x8x128xf32> to vector<8x128xf32>
    %288 = vector.broadcast %285 : f32 to vector<8x128xf32>
    %289 = arith.mulf %288, %287 : vector<8x128xf32>
    %290 = arith.addf %284, %289 : vector<8x128xf32>
    %c3_227 = arith.constant 3 : index
    %c3_228 = arith.constant 3 : index
    %291 = memref.load %arg1[%c3_227, %c3_228] : memref<8x8xf32, #tpu.memory_space<smem>>
    %c3_229 = arith.constant 3 : index
    %c0_230 = arith.constant 0 : index
    %c0_231 = arith.constant 0 : index
    %292 = vector.load %arg8[%c3_229, %c0_230, %c0_231] : memref<8x8x128xf32, #tpu.memory_space<vmem>>, vector<1x8x128xf32>
    %293 = vector.shape_cast %292 : vector<1x8x128xf32> to vector<8x128xf32>
    %294 = vector.broadcast %291 : f32 to vector<8x128xf32>
    %295 = arith.mulf %294, %293 : vector<8x128xf32>
    %296 = arith.addf %290, %295 : vector<8x128xf32>
    %c3_232 = arith.constant 3 : index
    %c4_233 = arith.constant 4 : index
    %297 = memref.load %arg1[%c3_232, %c4_233] : memref<8x8xf32, #tpu.memory_space<smem>>
    %c4_234 = arith.constant 4 : index
    %c0_235 = arith.constant 0 : index
    %c0_236 = arith.constant 0 : index
    %298 = vector.load %arg8[%c4_234, %c0_235, %c0_236] : memref<8x8x128xf32, #tpu.memory_space<vmem>>, vector<1x8x128xf32>
    %299 = vector.shape_cast %298 : vector<1x8x128xf32> to vector<8x128xf32>
    %300 = vector.broadcast %297 : f32 to vector<8x128xf32>
    %301 = arith.mulf %300, %299 : vector<8x128xf32>
    %302 = arith.addf %296, %301 : vector<8x128xf32>
    %c3_237 = arith.constant 3 : index
    %c5_238 = arith.constant 5 : index
    %303 = memref.load %arg1[%c3_237, %c5_238] : memref<8x8xf32, #tpu.memory_space<smem>>
    %c5_239 = arith.constant 5 : index
    %c0_240 = arith.constant 0 : index
    %c0_241 = arith.constant 0 : index
    %304 = vector.load %arg8[%c5_239, %c0_240, %c0_241] : memref<8x8x128xf32, #tpu.memory_space<vmem>>, vector<1x8x128xf32>
    %305 = vector.shape_cast %304 : vector<1x8x128xf32> to vector<8x128xf32>
    %306 = vector.broadcast %303 : f32 to vector<8x128xf32>
    %307 = arith.mulf %306, %305 : vector<8x128xf32>
    %308 = arith.addf %302, %307 : vector<8x128xf32>
    %c3_242 = arith.constant 3 : index
    %c6_243 = arith.constant 6 : index
    %309 = memref.load %arg1[%c3_242, %c6_243] : memref<8x8xf32, #tpu.memory_space<smem>>
    %c6_244 = arith.constant 6 : index
    %c0_245 = arith.constant 0 : index
    %c0_246 = arith.constant 0 : index
    %310 = vector.load %arg8[%c6_244, %c0_245, %c0_246] : memref<8x8x128xf32, #tpu.memory_space<vmem>>, vector<1x8x128xf32>
    %311 = vector.shape_cast %310 : vector<1x8x128xf32> to vector<8x128xf32>
    %312 = vector.broadcast %309 : f32 to vector<8x128xf32>
    %313 = arith.mulf %312, %311 : vector<8x128xf32>
    %314 = arith.addf %308, %313 : vector<8x128xf32>
    %c3_247 = arith.constant 3 : index
    %c7_248 = arith.constant 7 : index
    %315 = memref.load %arg1[%c3_247, %c7_248] : memref<8x8xf32, #tpu.memory_space<smem>>
    %c7_249 = arith.constant 7 : index
    %c0_250 = arith.constant 0 : index
    %c0_251 = arith.constant 0 : index
    %316 = vector.load %arg8[%c7_249, %c0_250, %c0_251] : memref<8x8x128xf32, #tpu.memory_space<vmem>>, vector<1x8x128xf32>
    %317 = vector.shape_cast %316 : vector<1x8x128xf32> to vector<8x128xf32>
    %318 = vector.broadcast %315 : f32 to vector<8x128xf32>
    %319 = arith.mulf %318, %317 : vector<8x128xf32>
    %320 = arith.addf %314, %319 : vector<8x128xf32>
    %c3_252 = arith.constant 3 : index
    %c0_253 = arith.constant 0 : index
    %c0_254 = arith.constant 0 : index
    %321 = vector.load %arg9[%c3_252, %c0_253, %c0_254] : memref<8x8x128xf32, #tpu.memory_space<vmem>>, vector<1x8x128xf32>
    %322 = vector.shape_cast %321 : vector<1x8x128xf32> to vector<8x128xf32>
    %323 = vector.shape_cast %320 : vector<8x128xf32> to vector<1x8x128xf32>
    tpu.vector_store %arg9[%c3_252, %c0_253, %c0_254], %323 {strides = array<i32>} : memref<8x8x128xf32, #tpu.memory_space<vmem>>, vector<1x8x128xf32>,
    %c4_255 = arith.constant 4 : index
    %c0_256 = arith.constant 0 : index
    %c0_257 = arith.constant 0 : index
    %324 = vector.load %arg7[%c4_255, %c0_256, %c0_257] : memref<8x8x1xf32, #tpu.memory_space<vmem>>, vector<1x8x1xf32>
    %325 = vector.shape_cast %324 : vector<1x8x1xf32> to vector<8x1xf32>
    %c4_258 = arith.constant 4 : index
    %c0_259 = arith.constant 0 : index
    %326 = memref.load %arg1[%c4_258, %c0_259] : memref<8x8xf32, #tpu.memory_space<smem>>
    %c0_260 = arith.constant 0 : index
    %c0_261 = arith.constant 0 : index
    %c0_262 = arith.constant 0 : index
    %327 = vector.load %arg8[%c0_260, %c0_261, %c0_262] : memref<8x8x128xf32, #tpu.memory_space<vmem>>, vector<1x8x128xf32>
    %328 = vector.shape_cast %327 : vector<1x8x128xf32> to vector<8x128xf32>
    %329 = vector.broadcast %326 : f32 to vector<8x128xf32>
    %330 = arith.mulf %329, %328 : vector<8x128xf32>
    %331 = vector.broadcast %325 : vector<8x1xf32> to vector<8x128xf32>
    %332 = arith.addf %331, %330 : vector<8x128xf32>
    %c4_263 = arith.constant 4 : index
    %c1_264 = arith.constant 1 : index
    %333 = memref.load %arg1[%c4_263, %c1_264] : memref<8x8xf32, #tpu.memory_space<smem>>
    %c1_265 = arith.constant 1 : index
    %c0_266 = arith.constant 0 : index
    %c0_267 = arith.constant 0 : index
    %334 = vector.load %arg8[%c1_265, %c0_266, %c0_267] : memref<8x8x128xf32, #tpu.memory_space<vmem>>, vector<1x8x128xf32>
    %335 = vector.shape_cast %334 : vector<1x8x128xf32> to vector<8x128xf32>
    %336 = vector.broadcast %333 : f32 to vector<8x128xf32>
    %337 = arith.mulf %336, %335 : vector<8x128xf32>
    %338 = arith.addf %332, %337 : vector<8x128xf32>
    %c4_268 = arith.constant 4 : index
    %c2_269 = arith.constant 2 : index
    %339 = memref.load %arg1[%c4_268, %c2_269] : memref<8x8xf32, #tpu.memory_space<smem>>
    %c2_270 = arith.constant 2 : index
    %c0_271 = arith.constant 0 : index
    %c0_272 = arith.constant 0 : index
    %340 = vector.load %arg8[%c2_270, %c0_271, %c0_272] : memref<8x8x128xf32, #tpu.memory_space<vmem>>, vector<1x8x128xf32>
    %341 = vector.shape_cast %340 : vector<1x8x128xf32> to vector<8x128xf32>
    %342 = vector.broadcast %339 : f32 to vector<8x128xf32>
    %343 = arith.mulf %342, %341 : vector<8x128xf32>
    %344 = arith.addf %338, %343 : vector<8x128xf32>
    %c4_273 = arith.constant 4 : index
    %c3_274 = arith.constant 3 : index
    %345 = memref.load %arg1[%c4_273, %c3_274] : memref<8x8xf32, #tpu.memory_space<smem>>
    %c3_275 = arith.constant 3 : index
    %c0_276 = arith.constant 0 : index
    %c0_277 = arith.constant 0 : index
    %346 = vector.load %arg8[%c3_275, %c0_276, %c0_277] : memref<8x8x128xf32, #tpu.memory_space<vmem>>, vector<1x8x128xf32>
    %347 = vector.shape_cast %346 : vector<1x8x128xf32> to vector<8x128xf32>
    %348 = vector.broadcast %345 : f32 to vector<8x128xf32>
    %349 = arith.mulf %348, %347 : vector<8x128xf32>
    %350 = arith.addf %344, %349 : vector<8x128xf32>
    %c4_278 = arith.constant 4 : index
    %c4_279 = arith.constant 4 : index
    %351 = memref.load %arg1[%c4_278, %c4_279] : memref<8x8xf32, #tpu.memory_space<smem>>
    %c4_280 = arith.constant 4 : index
    %c0_281 = arith.constant 0 : index
    %c0_282 = arith.constant 0 : index
    %352 = vector.load %arg8[%c4_280, %c0_281, %c0_282] : memref<8x8x128xf32, #tpu.memory_space<vmem>>, vector<1x8x128xf32>
    %353 = vector.shape_cast %352 : vector<1x8x128xf32> to vector<8x128xf32>
    %354 = vector.broadcast %351 : f32 to vector<8x128xf32>
    %355 = arith.mulf %354, %353 : vector<8x128xf32>
    %356 = arith.addf %350, %355 : vector<8x128xf32>
    %c4_283 = arith.constant 4 : index
    %c5_284 = arith.constant 5 : index
    %357 = memref.load %arg1[%c4_283, %c5_284] : memref<8x8xf32, #tpu.memory_space<smem>>
    %c5_285 = arith.constant 5 : index
    %c0_286 = arith.constant 0 : index
    %c0_287 = arith.constant 0 : index
    %358 = vector.load %arg8[%c5_285, %c0_286, %c0_287] : memref<8x8x128xf32, #tpu.memory_space<vmem>>, vector<1x8x128xf32>
    %359 = vector.shape_cast %358 : vector<1x8x128xf32> to vector<8x128xf32>
    %360 = vector.broadcast %357 : f32 to vector<8x128xf32>
    %361 = arith.mulf %360, %359 : vector<8x128xf32>
    %362 = arith.addf %356, %361 : vector<8x128xf32>
    %c4_288 = arith.constant 4 : index
    %c6_289 = arith.constant 6 : index
    %363 = memref.load %arg1[%c4_288, %c6_289] : memref<8x8xf32, #tpu.memory_space<smem>>
    %c6_290 = arith.constant 6 : index
    %c0_291 = arith.constant 0 : index
    %c0_292 = arith.constant 0 : index
    %364 = vector.load %arg8[%c6_290, %c0_291, %c0_292] : memref<8x8x128xf32, #tpu.memory_space<vmem>>, vector<1x8x128xf32>
    %365 = vector.shape_cast %364 : vector<1x8x128xf32> to vector<8x128xf32>
    %366 = vector.broadcast %363 : f32 to vector<8x128xf32>
    %367 = arith.mulf %366, %365 : vector<8x128xf32>
    %368 = arith.addf %362, %367 : vector<8x128xf32>
    %c4_293 = arith.constant 4 : index
    %c7_294 = arith.constant 7 : index
    %369 = memref.load %arg1[%c4_293, %c7_294] : memref<8x8xf32, #tpu.memory_space<smem>>
    %c7_295 = arith.constant 7 : index
    %c0_296 = arith.constant 0 : index
    %c0_297 = arith.constant 0 : index
    %370 = vector.load %arg8[%c7_295, %c0_296, %c0_297] : memref<8x8x128xf32, #tpu.memory_space<vmem>>, vector<1x8x128xf32>
    %371 = vector.shape_cast %370 : vector<1x8x128xf32> to vector<8x128xf32>
    %372 = vector.broadcast %369 : f32 to vector<8x128xf32>
    %373 = arith.mulf %372, %371 : vector<8x128xf32>
    %374 = arith.addf %368, %373 : vector<8x128xf32>
    %c4_298 = arith.constant 4 : index
    %c0_299 = arith.constant 0 : index
    %c0_300 = arith.constant 0 : index
    %375 = vector.load %arg9[%c4_298, %c0_299, %c0_300] : memref<8x8x128xf32, #tpu.memory_space<vmem>>, vector<1x8x128xf32>
    %376 = vector.shape_cast %375 : vector<1x8x128xf32> to vector<8x128xf32>
    %377 = vector.shape_cast %374 : vector<8x128xf32> to vector<1x8x128xf32>
    tpu.vector_store %arg9[%c4_298, %c0_299, %c0_300], %377 {strides = array<i32>} : memref<8x8x128xf32, #tpu.memory_space<vmem>>, vector<1x8x128xf32>,
    %c5_301 = arith.constant 5 : index
    %c0_302 = arith.constant 0 : index
    %c0_303 = arith.constant 0 : index
    %378 = vector.load %arg7[%c5_301, %c0_302, %c0_303] : memref<8x8x1xf32, #tpu.memory_space<vmem>>, vector<1x8x1xf32>
    %379 = vector.shape_cast %378 : vector<1x8x1xf32> to vector<8x1xf32>
    %c5_304 = arith.constant 5 : index
    %c0_305 = arith.constant 0 : index
    %380 = memref.load %arg1[%c5_304, %c0_305] : memref<8x8xf32, #tpu.memory_space<smem>>
    %c0_306 = arith.constant 0 : index
    %c0_307 = arith.constant 0 : index
    %c0_308 = arith.constant 0 : index
    %381 = vector.load %arg8[%c0_306, %c0_307, %c0_308] : memref<8x8x128xf32, #tpu.memory_space<vmem>>, vector<1x8x128xf32>
    %382 = vector.shape_cast %381 : vector<1x8x128xf32> to vector<8x128xf32>
    %383 = vector.broadcast %380 : f32 to vector<8x128xf32>
    %384 = arith.mulf %383, %382 : vector<8x128xf32>
    %385 = vector.broadcast %379 : vector<8x1xf32> to vector<8x128xf32>
    %386 = arith.addf %385, %384 : vector<8x128xf32>
    %c5_309 = arith.constant 5 : index
    %c1_310 = arith.constant 1 : index
    %387 = memref.load %arg1[%c5_309, %c1_310] : memref<8x8xf32, #tpu.memory_space<smem>>
    %c1_311 = arith.constant 1 : index
    %c0_312 = arith.constant 0 : index
    %c0_313 = arith.constant 0 : index
    %388 = vector.load %arg8[%c1_311, %c0_312, %c0_313] : memref<8x8x128xf32, #tpu.memory_space<vmem>>, vector<1x8x128xf32>
    %389 = vector.shape_cast %388 : vector<1x8x128xf32> to vector<8x128xf32>
    %390 = vector.broadcast %387 : f32 to vector<8x128xf32>
    %391 = arith.mulf %390, %389 : vector<8x128xf32>
    %392 = arith.addf %386, %391 : vector<8x128xf32>
    %c5_314 = arith.constant 5 : index
    %c2_315 = arith.constant 2 : index
    %393 = memref.load %arg1[%c5_314, %c2_315] : memref<8x8xf32, #tpu.memory_space<smem>>
    %c2_316 = arith.constant 2 : index
    %c0_317 = arith.constant 0 : index
    %c0_318 = arith.constant 0 : index
    %394 = vector.load %arg8[%c2_316, %c0_317, %c0_318] : memref<8x8x128xf32, #tpu.memory_space<vmem>>, vector<1x8x128xf32>
    %395 = vector.shape_cast %394 : vector<1x8x128xf32> to vector<8x128xf32>
    %396 = vector.broadcast %393 : f32 to vector<8x128xf32>
    %397 = arith.mulf %396, %395 : vector<8x128xf32>
    %398 = arith.addf %392, %397 : vector<8x128xf32>
    %c5_319 = arith.constant 5 : index
    %c3_320 = arith.constant 3 : index
    %399 = memref.load %arg1[%c5_319, %c3_320] : memref<8x8xf32, #tpu.memory_space<smem>>
    %c3_321 = arith.constant 3 : index
    %c0_322 = arith.constant 0 : index
    %c0_323 = arith.constant 0 : index
    %400 = vector.load %arg8[%c3_321, %c0_322, %c0_323] : memref<8x8x128xf32, #tpu.memory_space<vmem>>, vector<1x8x128xf32>
    %401 = vector.shape_cast %400 : vector<1x8x128xf32> to vector<8x128xf32>
    %402 = vector.broadcast %399 : f32 to vector<8x128xf32>
    %403 = arith.mulf %402, %401 : vector<8x128xf32>
    %404 = arith.addf %398, %403 : vector<8x128xf32>
    %c5_324 = arith.constant 5 : index
    %c4_325 = arith.constant 4 : index
    %405 = memref.load %arg1[%c5_324, %c4_325] : memref<8x8xf32, #tpu.memory_space<smem>>
    %c4_326 = arith.constant 4 : index
    %c0_327 = arith.constant 0 : index
    %c0_328 = arith.constant 0 : index
    %406 = vector.load %arg8[%c4_326, %c0_327, %c0_328] : memref<8x8x128xf32, #tpu.memory_space<vmem>>, vector<1x8x128xf32>
    %407 = vector.shape_cast %406 : vector<1x8x128xf32> to vector<8x128xf32>
    %408 = vector.broadcast %405 : f32 to vector<8x128xf32>
    %409 = arith.mulf %408, %407 : vector<8x128xf32>
    %410 = arith.addf %404, %409 : vector<8x128xf32>
    %c5_329 = arith.constant 5 : index
    %c5_330 = arith.constant 5 : index
    %411 = memref.load %arg1[%c5_329, %c5_330] : memref<8x8xf32, #tpu.memory_space<smem>>
    %c5_331 = arith.constant 5 : index
    %c0_332 = arith.constant 0 : index
    %c0_333 = arith.constant 0 : index
    %412 = vector.load %arg8[%c5_331, %c0_332, %c0_333] : memref<8x8x128xf32, #tpu.memory_space<vmem>>, vector<1x8x128xf32>
    %413 = vector.shape_cast %412 : vector<1x8x128xf32> to vector<8x128xf32>
    %414 = vector.broadcast %411 : f32 to vector<8x128xf32>
    %415 = arith.mulf %414, %413 : vector<8x128xf32>
    %416 = arith.addf %410, %415 : vector<8x128xf32>
    %c5_334 = arith.constant 5 : index
    %c6_335 = arith.constant 6 : index
    %417 = memref.load %arg1[%c5_334, %c6_335] : memref<8x8xf32, #tpu.memory_space<smem>>
    %c6_336 = arith.constant 6 : index
    %c0_337 = arith.constant 0 : index
    %c0_338 = arith.constant 0 : index
    %418 = vector.load %arg8[%c6_336, %c0_337, %c0_338] : memref<8x8x128xf32, #tpu.memory_space<vmem>>, vector<1x8x128xf32>
    %419 = vector.shape_cast %418 : vector<1x8x128xf32> to vector<8x128xf32>
    %420 = vector.broadcast %417 : f32 to vector<8x128xf32>
    %421 = arith.mulf %420, %419 : vector<8x128xf32>
    %422 = arith.addf %416, %421 : vector<8x128xf32>
    %c5_339 = arith.constant 5 : index
    %c7_340 = arith.constant 7 : index
    %423 = memref.load %arg1[%c5_339, %c7_340] : memref<8x8xf32, #tpu.memory_space<smem>>
    %c7_341 = arith.constant 7 : index
    %c0_342 = arith.constant 0 : index
    %c0_343 = arith.constant 0 : index
    %424 = vector.load %arg8[%c7_341, %c0_342, %c0_343] : memref<8x8x128xf32, #tpu.memory_space<vmem>>, vector<1x8x128xf32>
    %425 = vector.shape_cast %424 : vector<1x8x128xf32> to vector<8x128xf32>
    %426 = vector.broadcast %423 : f32 to vector<8x128xf32>
    %427 = arith.mulf %426, %425 : vector<8x128xf32>
    %428 = arith.addf %422, %427 : vector<8x128xf32>
    %c5_344 = arith.constant 5 : index
    %c0_345 = arith.constant 0 : index
    %c0_346 = arith.constant 0 : index
    %429 = vector.load %arg9[%c5_344, %c0_345, %c0_346] : memref<8x8x128xf32, #tpu.memory_space<vmem>>, vector<1x8x128xf32>
    %430 = vector.shape_cast %429 : vector<1x8x128xf32> to vector<8x128xf32>
    %431 = vector.shape_cast %428 : vector<8x128xf32> to vector<1x8x128xf32>
    tpu.vector_store %arg9[%c5_344, %c0_345, %c0_346], %431 {strides = array<i32>} : memref<8x8x128xf32, #tpu.memory_space<vmem>>, vector<1x8x128xf32>,
    %c6_347 = arith.constant 6 : index
    %c0_348 = arith.constant 0 : index
    %c0_349 = arith.constant 0 : index
    %432 = vector.load %arg7[%c6_347, %c0_348, %c0_349] : memref<8x8x1xf32, #tpu.memory_space<vmem>>, vector<1x8x1xf32>
    %433 = vector.shape_cast %432 : vector<1x8x1xf32> to vector<8x1xf32>
    %c6_350 = arith.constant 6 : index
    %c0_351 = arith.constant 0 : index
    %434 = memref.load %arg1[%c6_350, %c0_351] : memref<8x8xf32, #tpu.memory_space<smem>>
    %c0_352 = arith.constant 0 : index
    %c0_353 = arith.constant 0 : index
    %c0_354 = arith.constant 0 : index
    %435 = vector.load %arg8[%c0_352, %c0_353, %c0_354] : memref<8x8x128xf32, #tpu.memory_space<vmem>>, vector<1x8x128xf32>
    %436 = vector.shape_cast %435 : vector<1x8x128xf32> to vector<8x128xf32>
    %437 = vector.broadcast %434 : f32 to vector<8x128xf32>
    %438 = arith.mulf %437, %436 : vector<8x128xf32>
    %439 = vector.broadcast %433 : vector<8x1xf32> to vector<8x128xf32>
    %440 = arith.addf %439, %438 : vector<8x128xf32>
    %c6_355 = arith.constant 6 : index
    %c1_356 = arith.constant 1 : index
    %441 = memref.load %arg1[%c6_355, %c1_356] : memref<8x8xf32, #tpu.memory_space<smem>>
    %c1_357 = arith.constant 1 : index
    %c0_358 = arith.constant 0 : index
    %c0_359 = arith.constant 0 : index
    %442 = vector.load %arg8[%c1_357, %c0_358, %c0_359] : memref<8x8x128xf32, #tpu.memory_space<vmem>>, vector<1x8x128xf32>
    %443 = vector.shape_cast %442 : vector<1x8x128xf32> to vector<8x128xf32>
    %444 = vector.broadcast %441 : f32 to vector<8x128xf32>
    %445 = arith.mulf %444, %443 : vector<8x128xf32>
    %446 = arith.addf %440, %445 : vector<8x128xf32>
    %c6_360 = arith.constant 6 : index
    %c2_361 = arith.constant 2 : index
    %447 = memref.load %arg1[%c6_360, %c2_361] : memref<8x8xf32, #tpu.memory_space<smem>>
    %c2_362 = arith.constant 2 : index
    %c0_363 = arith.constant 0 : index
    %c0_364 = arith.constant 0 : index
    %448 = vector.load %arg8[%c2_362, %c0_363, %c0_364] : memref<8x8x128xf32, #tpu.memory_space<vmem>>, vector<1x8x128xf32>
    %449 = vector.shape_cast %448 : vector<1x8x128xf32> to vector<8x128xf32>
    %450 = vector.broadcast %447 : f32 to vector<8x128xf32>
    %451 = arith.mulf %450, %449 : vector<8x128xf32>
    %452 = arith.addf %446, %451 : vector<8x128xf32>
    %c6_365 = arith.constant 6 : index
    %c3_366 = arith.constant 3 : index
    %453 = memref.load %arg1[%c6_365, %c3_366] : memref<8x8xf32, #tpu.memory_space<smem>>
    %c3_367 = arith.constant 3 : index
    %c0_368 = arith.constant 0 : index
    %c0_369 = arith.constant 0 : index
    %454 = vector.load %arg8[%c3_367, %c0_368, %c0_369] : memref<8x8x128xf32, #tpu.memory_space<vmem>>, vector<1x8x128xf32>
    %455 = vector.shape_cast %454 : vector<1x8x128xf32> to vector<8x128xf32>
    %456 = vector.broadcast %453 : f32 to vector<8x128xf32>
    %457 = arith.mulf %456, %455 : vector<8x128xf32>
    %458 = arith.addf %452, %457 : vector<8x128xf32>
    %c6_370 = arith.constant 6 : index
    %c4_371 = arith.constant 4 : index
    %459 = memref.load %arg1[%c6_370, %c4_371] : memref<8x8xf32, #tpu.memory_space<smem>>
    %c4_372 = arith.constant 4 : index
    %c0_373 = arith.constant 0 : index
    %c0_374 = arith.constant 0 : index
    %460 = vector.load %arg8[%c4_372, %c0_373, %c0_374] : memref<8x8x128xf32, #tpu.memory_space<vmem>>, vector<1x8x128xf32>
    %461 = vector.shape_cast %460 : vector<1x8x128xf32> to vector<8x128xf32>
    %462 = vector.broadcast %459 : f32 to vector<8x128xf32>
    %463 = arith.mulf %462, %461 : vector<8x128xf32>
    %464 = arith.addf %458, %463 : vector<8x128xf32>
    %c6_375 = arith.constant 6 : index
    %c5_376 = arith.constant 5 : index
    %465 = memref.load %arg1[%c6_375, %c5_376] : memref<8x8xf32, #tpu.memory_space<smem>>
    %c5_377 = arith.constant 5 : index
    %c0_378 = arith.constant 0 : index
    %c0_379 = arith.constant 0 : index
    %466 = vector.load %arg8[%c5_377, %c0_378, %c0_379] : memref<8x8x128xf32, #tpu.memory_space<vmem>>, vector<1x8x128xf32>
    %467 = vector.shape_cast %466 : vector<1x8x128xf32> to vector<8x128xf32>
    %468 = vector.broadcast %465 : f32 to vector<8x128xf32>
    %469 = arith.mulf %468, %467 : vector<8x128xf32>
    %470 = arith.addf %464, %469 : vector<8x128xf32>
    %c6_380 = arith.constant 6 : index
    %c6_381 = arith.constant 6 : index
    %471 = memref.load %arg1[%c6_380, %c6_381] : memref<8x8xf32, #tpu.memory_space<smem>>
    %c6_382 = arith.constant 6 : index
    %c0_383 = arith.constant 0 : index
    %c0_384 = arith.constant 0 : index
    %472 = vector.load %arg8[%c6_382, %c0_383, %c0_384] : memref<8x8x128xf32, #tpu.memory_space<vmem>>, vector<1x8x128xf32>
    %473 = vector.shape_cast %472 : vector<1x8x128xf32> to vector<8x128xf32>
    %474 = vector.broadcast %471 : f32 to vector<8x128xf32>
    %475 = arith.mulf %474, %473 : vector<8x128xf32>
    %476 = arith.addf %470, %475 : vector<8x128xf32>
    %c6_385 = arith.constant 6 : index
    %c7_386 = arith.constant 7 : index
    %477 = memref.load %arg1[%c6_385, %c7_386] : memref<8x8xf32, #tpu.memory_space<smem>>
    %c7_387 = arith.constant 7 : index
    %c0_388 = arith.constant 0 : index
    %c0_389 = arith.constant 0 : index
    %478 = vector.load %arg8[%c7_387, %c0_388, %c0_389] : memref<8x8x128xf32, #tpu.memory_space<vmem>>, vector<1x8x128xf32>
    %479 = vector.shape_cast %478 : vector<1x8x128xf32> to vector<8x128xf32>
    %480 = vector.broadcast %477 : f32 to vector<8x128xf32>
    %481 = arith.mulf %480, %479 : vector<8x128xf32>
    %482 = arith.addf %476, %481 : vector<8x128xf32>
    %c6_390 = arith.constant 6 : index
    %c0_391 = arith.constant 0 : index
    %c0_392 = arith.constant 0 : index
    %483 = vector.load %arg9[%c6_390, %c0_391, %c0_392] : memref<8x8x128xf32, #tpu.memory_space<vmem>>, vector<1x8x128xf32>
    %484 = vector.shape_cast %483 : vector<1x8x128xf32> to vector<8x128xf32>
    %485 = vector.shape_cast %482 : vector<8x128xf32> to vector<1x8x128xf32>
    tpu.vector_store %arg9[%c6_390, %c0_391, %c0_392], %485 {strides = array<i32>} : memref<8x8x128xf32, #tpu.memory_space<vmem>>, vector<1x8x128xf32>,
    %c7_393 = arith.constant 7 : index
    %c0_394 = arith.constant 0 : index
    %c0_395 = arith.constant 0 : index
    %486 = vector.load %arg7[%c7_393, %c0_394, %c0_395] : memref<8x8x1xf32, #tpu.memory_space<vmem>>, vector<1x8x1xf32>
    %487 = vector.shape_cast %486 : vector<1x8x1xf32> to vector<8x1xf32>
    %c7_396 = arith.constant 7 : index
    %c0_397 = arith.constant 0 : index
    %488 = memref.load %arg1[%c7_396, %c0_397] : memref<8x8xf32, #tpu.memory_space<smem>>
    %c0_398 = arith.constant 0 : index
    %c0_399 = arith.constant 0 : index
    %c0_400 = arith.constant 0 : index
    %489 = vector.load %arg8[%c0_398, %c0_399, %c0_400] : memref<8x8x128xf32, #tpu.memory_space<vmem>>, vector<1x8x128xf32>
    %490 = vector.shape_cast %489 : vector<1x8x128xf32> to vector<8x128xf32>
    %491 = vector.broadcast %488 : f32 to vector<8x128xf32>
    %492 = arith.mulf %491, %490 : vector<8x128xf32>
    %493 = vector.broadcast %487 : vector<8x1xf32> to vector<8x128xf32>
    %494 = arith.addf %493, %492 : vector<8x128xf32>
    %c7_401 = arith.constant 7 : index
    %c1_402 = arith.constant 1 : index
    %495 = memref.load %arg1[%c7_401, %c1_402] : memref<8x8xf32, #tpu.memory_space<smem>>
    %c1_403 = arith.constant 1 : index
    %c0_404 = arith.constant 0 : index
    %c0_405 = arith.constant 0 : index
    %496 = vector.load %arg8[%c1_403, %c0_404, %c0_405] : memref<8x8x128xf32, #tpu.memory_space<vmem>>, vector<1x8x128xf32>
    %497 = vector.shape_cast %496 : vector<1x8x128xf32> to vector<8x128xf32>
    %498 = vector.broadcast %495 : f32 to vector<8x128xf32>
    %499 = arith.mulf %498, %497 : vector<8x128xf32>
    %500 = arith.addf %494, %499 : vector<8x128xf32>
    %c7_406 = arith.constant 7 : index
    %c2_407 = arith.constant 2 : index
    %501 = memref.load %arg1[%c7_406, %c2_407] : memref<8x8xf32, #tpu.memory_space<smem>>
    %c2_408 = arith.constant 2 : index
    %c0_409 = arith.constant 0 : index
    %c0_410 = arith.constant 0 : index
    %502 = vector.load %arg8[%c2_408, %c0_409, %c0_410] : memref<8x8x128xf32, #tpu.memory_space<vmem>>, vector<1x8x128xf32>
    %503 = vector.shape_cast %502 : vector<1x8x128xf32> to vector<8x128xf32>
    %504 = vector.broadcast %501 : f32 to vector<8x128xf32>
    %505 = arith.mulf %504, %503 : vector<8x128xf32>
    %506 = arith.addf %500, %505 : vector<8x128xf32>
    %c7_411 = arith.constant 7 : index
    %c3_412 = arith.constant 3 : index
    %507 = memref.load %arg1[%c7_411, %c3_412] : memref<8x8xf32, #tpu.memory_space<smem>>
    %c3_413 = arith.constant 3 : index
    %c0_414 = arith.constant 0 : index
    %c0_415 = arith.constant 0 : index
    %508 = vector.load %arg8[%c3_413, %c0_414, %c0_415] : memref<8x8x128xf32, #tpu.memory_space<vmem>>, vector<1x8x128xf32>
    %509 = vector.shape_cast %508 : vector<1x8x128xf32> to vector<8x128xf32>
    %510 = vector.broadcast %507 : f32 to vector<8x128xf32>
    %511 = arith.mulf %510, %509 : vector<8x128xf32>
    %512 = arith.addf %506, %511 : vector<8x128xf32>
    %c7_416 = arith.constant 7 : index
    %c4_417 = arith.constant 4 : index
    %513 = memref.load %arg1[%c7_416, %c4_417] : memref<8x8xf32, #tpu.memory_space<smem>>
    %c4_418 = arith.constant 4 : index
    %c0_419 = arith.constant 0 : index
    %c0_420 = arith.constant 0 : index
    %514 = vector.load %arg8[%c4_418, %c0_419, %c0_420] : memref<8x8x128xf32, #tpu.memory_space<vmem>>, vector<1x8x128xf32>
    %515 = vector.shape_cast %514 : vector<1x8x128xf32> to vector<8x128xf32>
    %516 = vector.broadcast %513 : f32 to vector<8x128xf32>
    %517 = arith.mulf %516, %515 : vector<8x128xf32>
    %518 = arith.addf %512, %517 : vector<8x128xf32>
    %c7_421 = arith.constant 7 : index
    %c5_422 = arith.constant 5 : index
    %519 = memref.load %arg1[%c7_421, %c5_422] : memref<8x8xf32, #tpu.memory_space<smem>>
    %c5_423 = arith.constant 5 : index
    %c0_424 = arith.constant 0 : index
    %c0_425 = arith.constant 0 : index
    %520 = vector.load %arg8[%c5_423, %c0_424, %c0_425] : memref<8x8x128xf32, #tpu.memory_space<vmem>>, vector<1x8x128xf32>
    %521 = vector.shape_cast %520 : vector<1x8x128xf32> to vector<8x128xf32>
    %522 = vector.broadcast %519 : f32 to vector<8x128xf32>
    %523 = arith.mulf %522, %521 : vector<8x128xf32>
    %524 = arith.addf %518, %523 : vector<8x128xf32>
    %c7_426 = arith.constant 7 : index
    %c6_427 = arith.constant 6 : index
    %525 = memref.load %arg1[%c7_426, %c6_427] : memref<8x8xf32, #tpu.memory_space<smem>>
    %c6_428 = arith.constant 6 : index
    %c0_429 = arith.constant 0 : index
    %c0_430 = arith.constant 0 : index
    %526 = vector.load %arg8[%c6_428, %c0_429, %c0_430] : memref<8x8x128xf32, #tpu.memory_space<vmem>>, vector<1x8x128xf32>
    %527 = vector.shape_cast %526 : vector<1x8x128xf32> to vector<8x128xf32>
    %528 = vector.broadcast %525 : f32 to vector<8x128xf32>
    %529 = arith.mulf %528, %527 : vector<8x128xf32>
    %530 = arith.addf %524, %529 : vector<8x128xf32>
    %c7_431 = arith.constant 7 : index
    %c7_432 = arith.constant 7 : index
    %531 = memref.load %arg1[%c7_431, %c7_432] : memref<8x8xf32, #tpu.memory_space<smem>>
    %c7_433 = arith.constant 7 : index
    %c0_434 = arith.constant 0 : index
    %c0_435 = arith.constant 0 : index
    %532 = vector.load %arg8[%c7_433, %c0_434, %c0_435] : memref<8x8x128xf32, #tpu.memory_space<vmem>>, vector<1x8x128xf32>
    %533 = vector.shape_cast %532 : vector<1x8x128xf32> to vector<8x128xf32>
    %534 = vector.broadcast %531 : f32 to vector<8x128xf32>
    %535 = arith.mulf %534, %533 : vector<8x128xf32>
    %536 = arith.addf %530, %535 : vector<8x128xf32>
    %c7_436 = arith.constant 7 : index
    %c0_437 = arith.constant 0 : index
    %c0_438 = arith.constant 0 : index
    %537 = vector.load %arg9[%c7_436, %c0_437, %c0_438] : memref<8x8x128xf32, #tpu.memory_space<vmem>>, vector<1x8x128xf32>
    %538 = vector.shape_cast %537 : vector<1x8x128xf32> to vector<8x128xf32>
    %539 = vector.shape_cast %536 : vector<8x128xf32> to vector<1x8x128xf32>
    tpu.vector_store %arg9[%c7_436, %c0_437, %c0_438], %539 {strides = array<i32>} : memref<8x8x128xf32, #tpu.memory_space<vmem>>, vector<1x8x128xf32>,
    return
  }
  func.func @transform_0(%arg0: i32) -> (i32, i32) {
    %c0_i32 = arith.constant 0 : i32
    %c0_i32_0 = arith.constant 0 : i32
    %c0_i32_1 = arith.constant 0 : i32
    return %c0_i32, %c0_i32_0 : i32, i32
  }
  func.func @transform_1(%arg0: i32) -> (i32, i32, i32) {
    %c0_i32 = arith.constant 0 : i32
    %c0_i32_0 = arith.constant 0 : i32
    %c0_i32_1 = arith.constant 0 : i32
    return %c0_i32, %c0_i32_0, %arg0 : i32, i32, i32
  }
  func.func @transform_2(%arg0: i32) -> (i32, i32) {
    %c0_i32 = arith.constant 0 : i32
    %c0_i32_0 = arith.constant 0 : i32
    %c0_i32_1 = arith.constant 0 : i32
    return %c0_i32, %c0_i32_0 : i32, i32
  }
  func.func @transform_3(%arg0: i32) -> (i32, i32) {
    %c0_i32 = arith.constant 0 : i32
    %c0_i32_0 = arith.constant 0 : i32
    %c0_i32_1 = arith.constant 0 : i32
    return %c0_i32, %c0_i32_0 : i32, i32
  }
  func.func @transform_4(%arg0: i32) -> (i32, i32) {
    %c0_i32 = arith.constant 0 : i32
    %c0_i32_0 = arith.constant 0 : i32
    %c0_i32_1 = arith.constant 0 : i32
    return %c0_i32, %c0_i32_0 : i32, i32
  }
  func.func @transform_5(%arg0: i32) -> (i32, i32) {
    %c0_i32 = arith.constant 0 : i32
    %c0_i32_0 = arith.constant 0 : i32
    %c0_i32_1 = arith.constant 0 : i32
    return %c0_i32, %c0_i32_0 : i32, i32
  }
  func.func @transform_6(%arg0: i32) -> (i32, i32, i32) {
    %c0_i32 = arith.constant 0 : i32
    %c0_i32_0 = arith.constant 0 : i32
    %c0_i32_1 = arith.constant 0 : i32
    %c0_i32_2 = arith.constant 0 : i32
    return %c0_i32, %c0_i32_0, %c0_i32_1 : i32, i32, i32
  }
  func.func @transform_7(%arg0: i32) -> (i32, i32, i32) {
    %c0_i32 = arith.constant 0 : i32
    %c0_i32_0 = arith.constant 0 : i32
    %c0_i32_1 = arith.constant 0 : i32
    return %c0_i32, %c0_i32_0, %arg0 : i32, i32, i32
  }
  func.func @transform_8(%arg0: i32) -> (i32, i32, i32) {
    %c0_i32 = arith.constant 0 : i32
    %c0_i32_0 = arith.constant 0 : i32
    %c0_i32_1 = arith.constant 0 : i32
    return %c0_i32, %c0_i32_0, %arg0 : i32, i32, i32
  }
}

</mosaic_0001>

<llo_original>
// kernel: tpu_custom_call.1
$region0: #{tpu_custom_call.1}
  #allocation0 [shape = 'u32[]', space=smem, size = 0x4, offset = 0x4, fixed_abs, tag = 'smem constant byte address 0x4 - core index']
  #allocation1 [shape = 'u32[72,128]{1,0:T(1,128)}', space=vmem, size = 0x9000, scoped, tag = 'internal scratch']
  %s0 = inlined_call_operand.vmem [shape: f32[8,8], index: 0, kind: input, shape index: {}]
  %s1 = inlined_call_operand.hbm [shape: f32[8,16,256], index: 1, kind: input, shape index: {}]
  %s2 = inlined_call_operand.vmem [shape: f32[32,16], index: 2, kind: input, shape index: {}]
  %s3 = inlined_call_operand.vmem [shape: f32[32,1], index: 3, kind: input, shape index: {}]
  %s4 = inlined_call_operand.vmem [shape: f32[8,32], index: 4, kind: input, shape index: {}]
  %s5 = inlined_call_operand.vmem [shape: f32[8,1], index: 5, kind: input, shape index: {}]
  %s6 = inlined_call_operand.vmem [shape: f32[8,8,1], index: 6, kind: input, shape index: {}]
  %s7 = inlined_call_operand.hbm [shape: f32[8,8,256], index: 7, kind: output, shape index: {0}]
  %s8 = inlined_call_operand.hbm [shape: f32[8,8,256], index: 8, kind: output, shape index: {1}]
  %9 = xla_tuple %s7, %s8
  %s10 = sld [smem:[#allocation0]]
  $region77: #{tpu_custom_call.1} parent=0
    _
  %s12 = ssub.s32 1, %s10
  %s13 = scalar_select 0, %s12, %s10
  $region1: #{tpu_custom_call.1} parent=0
    #allocation2 [shape = 'u8[4096]{0}', space=smem, size = 0x1000, scoped, tag = 'input window, operand 0, single buffered']
    #allocation3 [shape = 's32[2]{0}', space=sflag, size = 0x8, scoped, tag = 'scoped memory for tpu_custom_call.1']
    #allocation4 [shape = 's32[2]{0}', space=sflag, size = 0x8, scoped, tag = 'scoped memory for tpu_custom_call.1']
    #allocation5 [shape = 's32[2]{0}', space=sflag, size = 0x8, scoped, tag = 'scoped memory for tpu_custom_call.1']
    #allocation6 [shape = 'u8[131072]{0}', space=vmem, size = 0x20000, scoped, tag = 'input window, operand 1']
    #allocation7 [shape = 'u8[65536]{0}', space=vmem, size = 0x10000, scoped, tag = 'output window, operand 0']
    #allocation8 [shape = 'u8[65536]{0}', space=vmem, size = 0x10000, scoped, tag = 'output window, operand 1']
    #allocation9 [shape = 's32[2]{0}', space=sflag, size = 0x8, scoped, tag = 'scoped memory for tpu_custom_call.1']
    %14 = vsyncpa [#allocation5], 0
    %15 = vsyncpa [#allocation3], 0
    %s16 = scalar_lea.sflag [#allocation3], 1
    %17 = vsyncpa %s16, 0
    %18 = vsyncpa [#allocation4], 0
    %s19 = scalar_lea.sflag [#allocation4], 1
    %20 = vsyncpa %s19, 0
    %21 = vsyncpa [#allocation9], 0
    %s22 = scalar_lea.sflag [#allocation9], 1
    %23 = vsyncpa %s22, 0
    loop: start=0, step=1, limit=4
    $region2: #{tpu_custom_call.1} parent=1 // loop_pre_header
      _
    $region3: #{tpu_custom_call.1} parent=1 // loop_header
      %s25 = sphi 0, %s29
      %p26 = scmp.ge.s32.totalorder %s25, 4
      %s33 = sphi 0, %s33
      %s35 = sphi 0, %s33
      %s36 = sphi 0, %s35
      %s50 = sphi 0, %s36
      %s56 = sphi 0, %s58
      %s59 = sphi 0, %s56
      %s60 = sphi 0, %s59
      %s76 = sphi 0, %s60
      %s80 = sphi 0, %s80
      %s82 = sphi 0, %s80
      %s83 = sphi 0, %s82
      %s97 = sphi 0, %s83
      %s101 = sphi 0, %s101
      %s103 = sphi 0, %s101
      %s104 = sphi 0, %s103
      %s118 = sphi 0, %s104
      %s122 = sphi 0, %s122
      %s124 = sphi 0, %s122
      %s125 = sphi 0, %s124
      %s139 = sphi 0, %s125
      %s143 = sphi 0, %s143
      %s145 = sphi 0, %s143
      %s146 = sphi 0, %s145
      %s160 = sphi 0, %s146
      %s164 = sphi 0, %s164
      %s166 = sphi 0, %s164
      %s167 = sphi 0, %s166
      %s181 = sphi 0, %s167
      %s187 = sphi 0, %s189
      %s190 = sphi 0, %s187
      %s191 = sphi 0, %s190
      %s207 = sphi 0, %s191
      %s213 = sphi 0, %s215
      %s216 = sphi 0, %s213
      %s217 = sphi 0, %s216
      %s233 = sphi 0, %s217
    $region4: #{tpu_custom_call.1} parent=1 // loop_header_branch
      %28 = sbr.rel (%p26) target = $region8
    $region5: #{tpu_custom_call.1} parent=1 // loop_body
      %s30 = ssub.s32 %s25, 1
      %s31 = ssub.s32 %s25, 2
      %s32 = sadd.s32 %s25, 1
      %s34 = sadd.s32 %s33, 1
      %p37 = scmp.eq.s32.totalorder %s25, 1
      %p38 = scmp.ne.s32.totalorder %s33, %s35
      %p39 = scmp.eq.s32.totalorder %s25, 0
      %p40 = por %p38, %p39
      %p41 = scmp.ne.s32.totalorder %s33, %s35
      %p42 = scmp.eq.s32.totalorder %s30, 1
      %p43 = por %p41, %p42
      %p44 = scmp.ne.s32.totalorder %s35, %s36
      %p45 = scmp.eq.s32.totalorder %s30, 0
      %p46 = por %p44, %p45
      %p47 = scmp.ne.s32.totalorder %s35, %s36
      %p48 = scmp.eq.s32.totalorder %s31, 1
      %p49 = por %p47, %p48
      %p51 = scmp.ne.s32.totalorder %s36, %s50
      %p52 = scmp.eq.s32.totalorder %s31, 0
      %p53 = por %p51, %p52
      %s54 = ssub.s32 %s25, %s32
      %p55 = scmp.eq.s32.totalorder %s54, 0
      %s57 = sadd.s32 %s56, 1
      %s58 = scalar_select %p55, %s56, %s57
      %p61 = pneg %p55
      %p62 = scmp.eq.s32.totalorder %s25, 1
      %p63 = por %p61, %p62
      %p64 = scmp.ne.s32.totalorder %s56, %s59
      %p65 = scmp.eq.s32.totalorder %s25, 0
      %p66 = por %p64, %p65
      %p67 = scmp.ne.s32.totalorder %s56, %s59
      %p68 = scmp.eq.s32.totalorder %s30, 1
      %p69 = por %p67, %p68
      %p70 = scmp.ne.s32.totalorder %s59, %s60
      %p71 = scmp.eq.s32.totalorder %s30, 0
      %p72 = por %p70, %p71
      %p73 = scmp.ne.s32.totalorder %s59, %s60
      %p74 = scmp.eq.s32.totalorder %s31, 1
      %p75 = por %p73, %p74
      %p77 = scmp.ne.s32.totalorder %s60, %s76
      %p78 = scmp.eq.s32.totalorder %s31, 0
      %p79 = por %p77, %p78
      %s81 = sadd.s32 %s80, 1
      %p84 = scmp.eq.s32.totalorder %s25, 1
      %p85 = scmp.ne.s32.totalorder %s80, %s82
      %p86 = scmp.eq.s32.totalorder %s25, 0
      %p87 = por %p85, %p86
      %p88 = scmp.ne.s32.totalorder %s80, %s82
      %p89 = scmp.eq.s32.totalorder %s30, 1
      %p90 = por %p88, %p89
      %p91 = scmp.ne.s32.totalorder %s82, %s83
      %p92 = scmp.eq.s32.totalorder %s30, 0
      %p93 = por %p91, %p92
      %p94 = scmp.ne.s32.totalorder %s82, %s83
      %p95 = scmp.eq.s32.totalorder %s31, 1
      %p96 = por %p94, %p95
      %p98 = scmp.ne.s32.totalorder %s83, %s97
      %p99 = scmp.eq.s32.totalorder %s31, 0
      %p100 = por %p98, %p99
      %s102 = sadd.s32 %s101, 1
      %p105 = scmp.eq.s32.totalorder %s25, 1
      %p106 = scmp.ne.s32.totalorder %s101, %s103
      %p107 = scmp.eq.s32.totalorder %s25, 0
      %p108 = por %p106, %p107
      %p109 = scmp.ne.s32.totalorder %s101, %s103
      %p110 = scmp.eq.s32.totalorder %s30, 1
      %p111 = por %p109, %p110
      %p112 = scmp.ne.s32.totalorder %s103, %s104
      %p113 = scmp.eq.s32.totalorder %s30, 0
      %p114 = por %p112, %p113
      %p115 = scmp.ne.s32.totalorder %s103, %s104
      %p116 = scmp.eq.s32.totalorder %s31, 1
      %p117 = por %p115, %p116
      %p119 = scmp.ne.s32.totalorder %s104, %s118
      %p120 = scmp.eq.s32.totalorder %s31, 0
      %p121 = por %p119, %p120
      %s123 = sadd.s32 %s122, 1
      %p126 = scmp.eq.s32.totalorder %s25, 1
      %p127 = scmp.ne.s32.totalorder %s122, %s124
      %p128 = scmp.eq.s32.totalorder %s25, 0
      %p129 = por %p127, %p128
      %p130 = scmp.ne.s32.totalorder %s122, %s124
      %p131 = scmp.eq.s32.totalorder %s30, 1
      %p132 = por %p130, %p131
      %p133 = scmp.ne.s32.totalorder %s124, %s125
      %p134 = scmp.eq.s32.totalorder %s30, 0
      %p135 = por %p133, %p134
      %p136 = scmp.ne.s32.totalorder %s124, %s125
      %p137 = scmp.eq.s32.totalorder %s31, 1
      %p138 = por %p136, %p137
      %p140 = scmp.ne.s32.totalorder %s125, %s139
      %p141 = scmp.eq.s32.totalorder %s31, 0
      %p142 = por %p140, %p141
      %s144 = sadd.s32 %s143, 1
      %p147 = scmp.eq.s32.totalorder %s25, 1
      %p148 = scmp.ne.s32.totalorder %s143, %s145
      %p149 = scmp.eq.s32.totalorder %s25, 0
      %p150 = por %p148, %p149
      %p151 = scmp.ne.s32.totalorder %s143, %s145
      %p152 = scmp.eq.s32.totalorder %s30, 1
      %p153 = por %p151, %p152
      %p154 = scmp.ne.s32.totalorder %s145, %s146
      %p155 = scmp.eq.s32.totalorder %s30, 0
      %p156 = por %p154, %p155
      %p157 = scmp.ne.s32.totalorder %s145, %s146
      %p158 = scmp.eq.s32.totalorder %s31, 1
      %p159 = por %p157, %p158
      %p161 = scmp.ne.s32.totalorder %s146, %s160
      %p162 = scmp.eq.s32.totalorder %s31, 0
      %p163 = por %p161, %p162
      %s165 = sadd.s32 %s164, 1
      %p168 = scmp.eq.s32.totalorder %s25, 1
      %p169 = scmp.ne.s32.totalorder %s164, %s166
      %p170 = scmp.eq.s32.totalorder %s25, 0
      %p171 = por %p169, %p170
      %p172 = scmp.ne.s32.totalorder %s164, %s166
      %p173 = scmp.eq.s32.totalorder %s30, 1
      %p174 = por %p172, %p173
      %p175 = scmp.ne.s32.totalorder %s166, %s167
      %p176 = scmp.eq.s32.totalorder %s30, 0
      %p177 = por %p175, %p176
      %p178 = scmp.ne.s32.totalorder %s166, %s167
      %p179 = scmp.eq.s32.totalorder %s31, 1
      %p180 = por %p178, %p179
      %p182 = scmp.ne.s32.totalorder %s167, %s181
      %p183 = scmp.eq.s32.totalorder %s31, 0
      %p184 = por %p182, %p183
      %s185 = ssub.s32 %s25, %s32
      %p186 = scmp.eq.s32.totalorder %s185, 0
      %s188 = sadd.s32 %s187, 1
      %s189 = scalar_select %p186, %s187, %s188
      %p192 = pneg %p186
      %p193 = scmp.eq.s32.totalorder %s25, 1
      %p194 = por %p192, %p193
      %p195 = scmp.ne.s32.totalorder %s187, %s190
      %p196 = scmp.eq.s32.totalorder %s25, 0
      %p197 = por %p195, %p196
      %p198 = scmp.ne.s32.totalorder %s187, %s190
      %p199 = scmp.eq.s32.totalorder %s30, 1
      %p200 = por %p198, %p199
      %p201 = scmp.ne.s32.totalorder %s190, %s191
      %p202 = scmp.eq.s32.totalorder %s30, 0
      %p203 = por %p201, %p202
      %p204 = scmp.ne.s32.totalorder %s190, %s191
      %p205 = scmp.eq.s32.totalorder %s31, 1
      %p206 = por %p204, %p205
      %p208 = scmp.ne.s32.totalorder %s191, %s207
      %p209 = scmp.eq.s32.totalorder %s31, 0
      %p210 = por %p208, %p209
      %s211 = ssub.s32 %s25, %s32
      %p212 = scmp.eq.s32.totalorder %s211, 0
      %s214 = sadd.s32 %s213, 1
      %s215 = scalar_select %p212, %s213, %s214
      %p218 = pneg %p212
      %p219 = scmp.eq.s32.totalorder %s25, 1
      %p220 = por %p218, %p219
      %p221 = scmp.ne.s32.totalorder %s213, %s216
      %p222 = scmp.eq.s32.totalorder %s25, 0
      %p223 = por %p221, %p222
      %p224 = scmp.ne.s32.totalorder %s213, %s216
      %p225 = scmp.eq.s32.totalorder %s30, 1
      %p226 = por %p224, %p225
      %p227 = scmp.ne.s32.totalorder %s216, %s217
      %p228 = scmp.eq.s32.totalorder %s30, 0
      %p229 = por %p227, %p228
      %p230 = scmp.ne.s32.totalorder %s216, %s217
      %p231 = scmp.eq.s32.totalorder %s31, 1
      %p232 = por %p230, %p231
      %p234 = scmp.ne.s32.totalorder %s217, %s233
      %p235 = scmp.eq.s32.totalorder %s31, 0
      %p236 = por %p234, %p235
      %p237 = scmp.le.s32.totalorder 1, %s25
      %p238 = scmp.lt.s32.totalorder %s25, 3
      %p239 = pnand %p237, %p238
      %p240 = pneg %p239
      // Predicated region
      $region9: #{tpu_custom_call.1} parent=5 // pred_check
        _
      $region10: #{tpu_custom_call.1} parent=5 // pred_check_branch
        %242 = sbr.rel (%p239) target = $region12
      $region11: #{tpu_custom_call.1} parent=5 // pred_region
        %s243 = ssub.s32 %s25, 1
        // Predicated region
        $region13: #{tpu_custom_call.1} parent=11 // pred_check
          %p244 = pneg %p46
        $region14: #{tpu_custom_call.1} parent=11 // pred_check_branch
          %246 = sbr.rel (%p244) target = $region16
        $region15: #{tpu_custom_call.1} parent=11 // pred_region
          %248 = vsyncadd [#allocation5], 0
          %s250 = sshll.u32 %s0, 4
          %s251 = int_to_ptr.vmem [resolvable:$true] %s250
          %253 = dma.vmem_to_smem %s251, 128, [#allocation2], [#allocation5]
        $region16: #{tpu_custom_call.1} parent=11 // pred_fallthru
          _
        // Predicated region
        $region17: #{tpu_custom_call.1} parent=11 // pred_check
          %p254 = pneg %p93
        $region18: #{tpu_custom_call.1} parent=11 // pred_check_branch
          %256 = sbr.rel (%p254) target = $region20
        $region19: #{tpu_custom_call.1} parent=11 // pred_region
          _
        $region20: #{tpu_custom_call.1} parent=11 // pred_fallthru
          _
        // Predicated region
        $region21: #{tpu_custom_call.1} parent=11 // pred_check
          %p257 = pneg %p114
        $region22: #{tpu_custom_call.1} parent=11 // pred_check_branch
          %259 = sbr.rel (%p257) target = $region24
        $region23: #{tpu_custom_call.1} parent=11 // pred_region
          _
        $region24: #{tpu_custom_call.1} parent=11 // pred_fallthru
          _
        // Predicated region
        $region25: #{tpu_custom_call.1} parent=11 // pred_check
          %p260 = pneg %p135
        $region26: #{tpu_custom_call.1} parent=11 // pred_check_branch
          %262 = sbr.rel (%p260) target = $region28
        $region27: #{tpu_custom_call.1} parent=11 // pred_region
          _
        $region28: #{tpu_custom_call.1} parent=11 // pred_fallthru
          _
        // Predicated region
        $region29: #{tpu_custom_call.1} parent=11 // pred_check
          %p263 = pneg %p156
        $region30: #{tpu_custom_call.1} parent=11 // pred_check_branch
          %265 = sbr.rel (%p263) target = $region32
        $region31: #{tpu_custom_call.1} parent=11 // pred_region
          _
        $region32: #{tpu_custom_call.1} parent=11 // pred_fallthru
          _
        // Predicated region
        $region33: #{tpu_custom_call.1} parent=11 // pred_check
          %p266 = pneg %p177
        $region34: #{tpu_custom_call.1} parent=11 // pred_check_branch
          %268 = sbr.rel (%p266) target = $region36
        $region35: #{tpu_custom_call.1} parent=11 // pred_region
          _
        $region36: #{tpu_custom_call.1} parent=11 // pred_fallthru
          _
      $region12: #{tpu_custom_call.1} parent=5 // pred_fallthru
        _
      %p269 = scmp.lt.s32.totalorder %s25, 2
      // Predicated region
      $region37: #{tpu_custom_call.1} parent=5 // pred_check
        %p270 = pneg %p269
      $region38: #{tpu_custom_call.1} parent=5 // pred_check_branch
        %272 = sbr.rel (%p270) target = $region40
      $region39: #{tpu_custom_call.1} parent=5 // pred_region
        // Predicated region
        $region41: #{tpu_custom_call.1} parent=39 // pred_check
          %p273 = pneg %p66
        $region42: #{tpu_custom_call.1} parent=39 // pred_check_branch
          %275 = sbr.rel (%p273) target = $region44
        $region43: #{tpu_custom_call.1} parent=39 // pred_region
          %s276 = sand.u32 %s56, 1
          %s277 = scalar_lea.sflag [#allocation3], %s276
          %s278 = sand.u32 %s56, 1
          %s279 = smul.addr %s278, 128
          %s280 = scalar_lea.vmem [#allocation6], %s279
          %282 = vsyncadd %s277, 0
          %s283 = smul.addr %s25, 8
          %s284 = scalar_lea.hbm %s1, %s283
          %s285 = sshll.u32 %s284, 4
          %s286 = int_to_ptr.hbm [resolvable:$true] %s285
          %s287 = sshll.u32 %s280, 4
          %s288 = int_to_ptr.vmem [resolvable:$true] %s287
          %293 = dma.hbm_to_vmem [thread:$0]  %s286, 2048, %s288, %s277, 256, 128, 8
        $region44: #{tpu_custom_call.1} parent=39 // pred_fallthru
          _
      $region40: #{tpu_custom_call.1} parent=5 // pred_fallthru
        _
      %p294 = scmp.le.s32.totalorder 1, %s25
      %p295 = scmp.lt.s32.totalorder %s25, 3
      %p296 = pnand %p294, %p295
      %p297 = pneg %p296
      // Predicated region
      $region45: #{tpu_custom_call.1} parent=5 // pred_check
        _
      $region46: #{tpu_custom_call.1} parent=5 // pred_check_branch
        %299 = sbr.rel (%p296) target = $region48
      $region47: #{tpu_custom_call.1} parent=5 // pred_region
        %s300 = ssub.s32 %s25, 1
        // Predicated region
        $region49: #{tpu_custom_call.1} parent=47 // pred_check
          %p301 = pneg %p46
        $region50: #{tpu_custom_call.1} parent=47 // pred_check_branch
          %303 = sbr.rel (%p301) target = $region52
        $region51: #{tpu_custom_call.1} parent=47 // pred_region
          %305 = dma.done [#allocation5], 128
        $region52: #{tpu_custom_call.1} parent=47 // pred_fallthru
          _
        %s306 = sand.u32 %s59, 1
        %s307 = scalar_lea.sflag [#allocation3], %s306
        %s308 = sand.u32 %s59, 1
        %s309 = smul.addr %s308, 128
        %s310 = scalar_lea.vmem [#allocation6], %s309
        // Predicated region
        $region53: #{tpu_custom_call.1} parent=47 // pred_check
          %p311 = pneg %p72
        $region54: #{tpu_custom_call.1} parent=47 // pred_check_branch
          %313 = sbr.rel (%p311) target = $region56
        $region55: #{tpu_custom_call.1} parent=47 // pred_region
          %315 = dma.done %s307, 2048
        $region56: #{tpu_custom_call.1} parent=47 // pred_fallthru
          _
        %316 = sfence
        %p317 = pneg %p46
        %p318 = pneg %p43
        %s319 = sand.u32 %s59, 1
        %s320 = scalar_lea.sflag [#allocation3], %s319
        %s321 = sand.u32 %s59, 1
        %s322 = smul.addr %s321, 128
        %s323 = scalar_lea.vmem [#allocation6], %s322
        %p324 = pneg %p72
        %p325 = pneg %p69
        %p326 = pneg %p93
        %p327 = pneg %p90
        %p328 = pneg %p114
        %p329 = pneg %p111
        %p330 = pneg %p135
        %p331 = pneg %p132
        %p332 = pneg %p156
        %p333 = pneg %p153
        %p334 = pneg %p177
        %p335 = pneg %p174
        %p336 = pneg %p203
        %p337 = pneg %p200
        %s338 = sand.u32 %s190, 1
        %s339 = scalar_lea.sflag [#allocation4], %s338
        %s340 = sand.u32 %s190, 1
        %s341 = smul.addr %s340, 64
        %s342 = scalar_lea.vmem [#allocation7], %s341
        %p343 = pneg %p229
        %p344 = pneg %p226
        %s345 = sand.u32 %s216, 1
        %s346 = scalar_lea.sflag [#allocation9], %s345
        %s347 = sand.u32 %s216, 1
        %s348 = smul.addr %s347, 64
        %s349 = scalar_lea.vmem [#allocation8], %s348
        %v350 = vld [vmem:[%s2] sm:$0xff]
        %v351 = vld [vmem:[%s2 + $0x8] sm:$0xff]
        %v352 = vld [vmem:[%s2 + $0x10] sm:$0xff]
        %v353 = vld [vmem:[%s2 + $0x18] sm:$0xff]
        %v354 = vld [vmem:[%s3] sm:$0xff]
        %v355 = vld [vmem:[%s3 + $0x8] sm:$0xff]
        %v356 = vld [vmem:[%s3 + $0x10] sm:$0xff]
        %v357 = vld [vmem:[%s3 + $0x18] sm:$0xff]
        %v358 = vld [vmem:[%s4] sm:$0xff]
        %v359 = vld [vmem:[%s5] sm:$0xff]
        %v360 = vld [vmem:[%s310] sm:$0xff]
        %v361 = vld [vmem:[%s310 + $0x8] sm:$0xff]
        %363 = vset.pattern.permute.xlu0 0
        %364 = vperm.xlu0 %363, %v354
        %v365 = vpop.permute.xlu0 %364
        %368 = vset.pattern.permute.xlu0 0
        %369 = vperm.xlu0 %368, %v355
        %v370 = vpop.permute.xlu0 %369
        %373 = vset.pattern.permute.xlu0 0
        %374 = vperm.xlu0 %373, %v356
        %v375 = vpop.permute.xlu0 %374
        %378 = vset.pattern.permute.xlu0 0
        %379 = vperm.xlu0 %378, %v357
        %v380 = vpop.permute.xlu0 %379
        %vm382 = vcmask 130048
        %v384 = vsel %vm382, %v350, 0
        %v387 = vsel %vm382, %v351, 0
        %v390 = vsel %vm382, %v352, 0
        %v393 = vsel %vm382, %v353, 0
        %395 = vmatpush.msra.mxu0 0.0
        %396 = vmatpush.msra.mxu0 0.0
        %397 = vmatpush.msra.mxu0 0.0
        %398 = vmatpush.msra.mxu0 0.0
        %399 = vmatpush.msra.mxu0 0.0
        %400 = vmatpush.msra.mxu0 0.0
        %401 = vmatpush.msra.mxu0 0.0
        %402 = vmatpush.msra.mxu0 0.0
        %403 = vmatpush.msra.mxu0 0.0
        %404 = vmatpush.msra.mxu0 0.0
        %405 = vmatpush.msra.mxu0 0.0
        %406 = vmatpush.msra.mxu0 0.0
        %407 = vmatpush.msra.mxu0 0.0
        %408 = vmatpush.msra.mxu0 0.0
        %409 = vmatpush.msra.mxu0 %v361
        %410 = vmatpush.msra.mxu0 %v360
        %411 = vmatmul.f32.gmra.mxu0 %v384
        %v412 = vpop.f32.mrf.mxu0
        %v413 = vadd.f32 %v365, %v412
        %414 = vmatmul.f32.gmra.mxu0 %v387
        %v415 = vpop.f32.mrf.mxu0
        %v416 = vadd.f32 %v370, %v415
        %417 = vmatmul.f32.gmra.mxu0 %v390
        %v418 = vpop.f32.mrf.mxu0
        %v419 = vadd.f32 %v375, %v418
        %420 = vmatmul.f32.gmra.mxu0 %v393
        %v421 = vpop.f32.mrf.mxu0
        %v422 = vadd.f32 %v380, %v421
        %423 = vdwg.mxu0
        %v424 = vmax.f32 %v413, 0.0
        %v425 = vmax.f32 %v416, 0.0
        %v426 = vmax.f32 %v419, 0.0
        %v427 = vmax.f32 %v422, 0.0
        %429 = vset.pattern.permute.xlu0 0
        %430 = vperm.xlu0 %429, %v359
        %v431 = vpop.permute.xlu0 %430
        %vm433 = vcmask 261120
        %v435 = vsel %vm433, %v358, 0
        %437 = vmatpush.msra.mxu0 0.0
        %438 = vmatpush.msra.mxu0 0.0
        %439 = vmatpush.msra.mxu0 0.0
        %440 = vmatpush.msra.mxu0 0.0
        %441 = vmatpush.msra.mxu0 0.0
        %442 = vmatpush.msra.mxu0 0.0
        %443 = vmatpush.msra.mxu0 0.0
        %444 = vmatpush.msra.mxu0 0.0
        %445 = vmatpush.msra.mxu0 0.0
        %446 = vmatpush.msra.mxu0 0.0
        %447 = vmatpush.msra.mxu0 0.0
        %448 = vmatpush.msra.mxu0 0.0
        %449 = vmatpush.msra.mxu0 %v427
        %450 = vmatpush.msra.mxu0 %v426
        %451 = vmatpush.msra.mxu0 %v425
        %452 = vmatpush.msra.mxu0 %v424
        %453 = vmatmul.f32.gmra.mxu0 %v435
        %v454 = vpop.f32.mrf.mxu0
        %v455 = vadd.f32 %v431, %v454
        %456 = vdwg.mxu0
        %457 = vst [vmem:[%s342] sm:$0xff] %v455
        %s458 = scalar_lea.vmem %s310, 16 [#allocation6]
        %v459 = vld [vmem:[%s458] sm:$0xff]
        %v460 = vld [vmem:[%s458 + $0x8] sm:$0xff]
        %461 = vmatpush.msra.mxu0 0.0
        %462 = vmatpush.msra.mxu0 0.0
        %463 = vmatpush.msra.mxu0 0.0
        %464 = vmatpush.msra.mxu0 0.0
        %465 = vmatpush.msra.mxu0 0.0
        %466 = vmatpush.msra.mxu0 0.0
        %467 = vmatpush.msra.mxu0 0.0
        %468 = vmatpush.msra.mxu0 0.0
        %469 = vmatpush.msra.mxu0 0.0
        %470 = vmatpush.msra.mxu0 0.0
        %471 = vmatpush.msra.mxu0 0.0
        %472 = vmatpush.msra.mxu0 0.0
        %473 = vmatpush.msra.mxu0 0.0
        %474 = vmatpush.msra.mxu0 0.0
        %475 = vmatpush.msra.mxu0 %v460
        %476 = vmatpush.msra.mxu0 %v459
        %477 = vmatmul.f32.gmra.mxu0 %v384
        %v478 = vpop.f32.mrf.mxu0
        %v479 = vadd.f32 %v365, %v478
        %480 = vmatmul.f32.gmra.mxu0 %v387
        %v481 = vpop.f32.mrf.mxu0
        %v482 = vadd.f32 %v370, %v481
        %483 = vmatmul.f32.gmra.mxu0 %v390
        %v484 = vpop.f32.mrf.mxu0
        %v485 = vadd.f32 %v375, %v484
        %486 = vmatmul.f32.gmra.mxu0 %v393
        %v487 = vpop.f32.mrf.mxu0
        %v488 = vadd.f32 %v380, %v487
        %489 = vdwg.mxu0
        %v490 = vmax.f32 %v479, 0.0
        %v491 = vmax.f32 %v482, 0.0
        %v492 = vmax.f32 %v485, 0.0
        %v493 = vmax.f32 %v488, 0.0
        %494 = vmatpush.msra.mxu0 0.0
        %495 = vmatpush.msra.mxu0 0.0
        %496 = vmatpush.msra.mxu0 0.0
        %497 = vmatpush.msra.mxu0 0.0
        %498 = vmatpush.msra.mxu0 0.0
        %499 = vmatpush.msra.mxu0 0.0
        %500 = vmatpush.msra.mxu0 0.0
        %501 = vmatpush.msra.mxu0 0.0
        %502 = vmatpush.msra.mxu0 0.0
        %503 = vmatpush.msra.mxu0 0.0
        %504 = vmatpush.msra.mxu0 0.0
        %505 = vmatpush.msra.mxu0 0.0
        %506 = vmatpush.msra.mxu0 %v493
        %507 = vmatpush.msra.mxu0 %v492
        %508 = vmatpush.msra.mxu0 %v491
        %509 = vmatpush.msra.mxu0 %v490
        %510 = vmatmul.f32.gmra.mxu0 %v435
        %v511 = vpop.f32.mrf.mxu0
        %v512 = vadd.f32 %v431, %v511
        %513 = vdwg.mxu0
        %s514 = scalar_lea.vmem %s342, 8 [#allocation7]
        %515 = vst [vmem:[%s514] sm:$0xff] %v512
        %s516 = scalar_lea.vmem %s310, 32 [#allocation6]
        %v517 = vld [vmem:[%s516] sm:$0xff]
        %v518 = vld [vmem:[%s516 + $0x8] sm:$0xff]
        %519 = vmatpush.msra.mxu0 0.0
        %520 = vmatpush.msra.mxu0 0.0
        %521 = vmatpush.msra.mxu0 0.0
        %522 = vmatpush.msra.mxu0 0.0
        %523 = vmatpush.msra.mxu0 0.0
        %524 = vmatpush.msra.mxu0 0.0
        %525 = vmatpush.msra.mxu0 0.0
        %526 = vmatpush.msra.mxu0 0.0
        %527 = vmatpush.msra.mxu0 0.0
        %528 = vmatpush.msra.mxu0 0.0
        %529 = vmatpush.msra.mxu0 0.0
        %530 = vmatpush.msra.mxu0 0.0
        %531 = vmatpush.msra.mxu0 0.0
        %532 = vmatpush.msra.mxu0 0.0
        %533 = vmatpush.msra.mxu0 %v518
        %534 = vmatpush.msra.mxu0 %v517
        %535 = vmatmul.f32.gmra.mxu0 %v384
        %v536 = vpop.f32.mrf.mxu0
        %v537 = vadd.f32 %v365, %v536
        %538 = vmatmul.f32.gmra.mxu0 %v387
        %v539 = vpop.f32.mrf.mxu0
        %v540 = vadd.f32 %v370, %v539
        %541 = vmatmul.f32.gmra.mxu0 %v390
        %v542 = vpop.f32.mrf.mxu0
        %v543 = vadd.f32 %v375, %v542
        %544 = vmatmul.f32.gmra.mxu0 %v393
        %v545 = vpop.f32.mrf.mxu0
        %v546 = vadd.f32 %v380, %v545
        %547 = vdwg.mxu0
        %v548 = vmax.f32 %v537, 0.0
        %v549 = vmax.f32 %v540, 0.0
        %v550 = vmax.f32 %v543, 0.0
        %v551 = vmax.f32 %v546, 0.0
        %552 = vmatpush.msra.mxu0 0.0
        %553 = vmatpush.msra.mxu0 0.0
        %554 = vmatpush.msra.mxu0 0.0
        %555 = vmatpush.msra.mxu0 0.0
        %556 = vmatpush.msra.mxu0 0.0
        %557 = vmatpush.msra.mxu0 0.0
        %558 = vmatpush.msra.mxu0 0.0
        %559 = vmatpush.msra.mxu0 0.0
        %560 = vmatpush.msra.mxu0 0.0
        %561 = vmatpush.msra.mxu0 0.0
        %562 = vmatpush.msra.mxu0 0.0
        %563 = vmatpush.msra.mxu0 0.0
        %564 = vmatpush.msra.mxu0 %v551
        %565 = vmatpush.msra.mxu0 %v550
        %566 = vmatpush.msra.mxu0 %v549
        %567 = vmatpush.msra.mxu0 %v548
        %568 = vmatmul.f32.gmra.mxu0 %v435
        %v569 = vpop.f32.mrf.mxu0
        %v570 = vadd.f32 %v431, %v569
        %571 = vdwg.mxu0
        %s572 = scalar_lea.vmem %s342, 16 [#allocation7]
        %573 = vst [vmem:[%s572] sm:$0xff] %v570
        %s574 = scalar_lea.vmem %s310, 48 [#allocation6]
        %v575 = vld [vmem:[%s574] sm:$0xff]
        %v576 = vld [vmem:[%s574 + $0x8] sm:$0xff]
        %577 = vmatpush.msra.mxu0 0.0
        %578 = vmatpush.msra.mxu0 0.0
        %579 = vmatpush.msra.mxu0 0.0
        %580 = vmatpush.msra.mxu0 0.0
        %581 = vmatpush.msra.mxu0 0.0
        %582 = vmatpush.msra.mxu0 0.0
        %583 = vmatpush.msra.mxu0 0.0
        %584 = vmatpush.msra.mxu0 0.0
        %585 = vmatpush.msra.mxu0 0.0
        %586 = vmatpush.msra.mxu0 0.0
        %587 = vmatpush.msra.mxu0 0.0
        %588 = vmatpush.msra.mxu0 0.0
        %589 = vmatpush.msra.mxu0 0.0
        %590 = vmatpush.msra.mxu0 0.0
        %591 = vmatpush.msra.mxu0 %v576
        %592 = vmatpush.msra.mxu0 %v575
        %593 = vmatmul.f32.gmra.mxu0 %v384
        %v594 = vpop.f32.mrf.mxu0
        %v595 = vadd.f32 %v365, %v594
        %596 = vmatmul.f32.gmra.mxu0 %v387
        %v597 = vpop.f32.mrf.mxu0
        %v598 = vadd.f32 %v370, %v597
        %599 = vmatmul.f32.gmra.mxu0 %v390
        %v600 = vpop.f32.mrf.mxu0
        %v601 = vadd.f32 %v375, %v600
        %602 = vmatmul.f32.gmra.mxu0 %v393
        %v603 = vpop.f32.mrf.mxu0
        %v604 = vadd.f32 %v380, %v603
        %605 = vdwg.mxu0
        %v606 = vmax.f32 %v595, 0.0
        %v607 = vmax.f32 %v598, 0.0
        %v608 = vmax.f32 %v601, 0.0
        %v609 = vmax.f32 %v604, 0.0
        %610 = vmatpush.msra.mxu0 0.0
        %611 = vmatpush.msra.mxu0 0.0
        %612 = vmatpush.msra.mxu0 0.0
        %613 = vmatpush.msra.mxu0 0.0
        %614 = vmatpush.msra.mxu0 0.0
        %615 = vmatpush.msra.mxu0 0.0
        %616 = vmatpush.msra.mxu0 0.0
        %617 = vmatpush.msra.mxu0 0.0
        %618 = vmatpush.msra.mxu0 0.0
        %619 = vmatpush.msra.mxu0 0.0
        %620 = vmatpush.msra.mxu0 0.0
        %621 = vmatpush.msra.mxu0 0.0
        %622 = vmatpush.msra.mxu0 %v609
        %623 = vmatpush.msra.mxu0 %v608
        %624 = vmatpush.msra.mxu0 %v607
        %625 = vmatpush.msra.mxu0 %v606
        %626 = vmatmul.f32.gmra.mxu0 %v435
        %v627 = vpop.f32.mrf.mxu0
        %v628 = vadd.f32 %v431, %v627
        %629 = vdwg.mxu0
        %s630 = scalar_lea.vmem %s342, 24 [#allocation7]
        %631 = vst [vmem:[%s630] sm:$0xff] %v628
        %s632 = scalar_lea.vmem %s310, 64 [#allocation6]
        %v633 = vld [vmem:[%s632] sm:$0xff]
        %v634 = vld [vmem:[%s632 + $0x8] sm:$0xff]
        %635 = vmatpush.msra.mxu0 0.0
        %636 = vmatpush.msra.mxu0 0.0
        %637 = vmatpush.msra.mxu0 0.0
        %638 = vmatpush.msra.mxu0 0.0
        %639 = vmatpush.msra.mxu0 0.0
        %640 = vmatpush.msra.mxu0 0.0
        %641 = vmatpush.msra.mxu0 0.0
        %642 = vmatpush.msra.mxu0 0.0
        %643 = vmatpush.msra.mxu0 0.0
        %644 = vmatpush.msra.mxu0 0.0
        %645 = vmatpush.msra.mxu0 0.0
        %646 = vmatpush.msra.mxu0 0.0
        %647 = vmatpush.msra.mxu0 0.0
        %648 = vmatpush.msra.mxu0 0.0
        %649 = vmatpush.msra.mxu0 %v634
        %650 = vmatpush.msra.mxu0 %v633
        %651 = vmatmul.f32.gmra.mxu0 %v384
        %v652 = vpop.f32.mrf.mxu0
        %v653 = vadd.f32 %v365, %v652
        %654 = vmatmul.f32.gmra.mxu0 %v387
        %v655 = vpop.f32.mrf.mxu0
        %v656 = vadd.f32 %v370, %v655
        %657 = vmatmul.f32.gmra.mxu0 %v390
        %v658 = vpop.f32.mrf.mxu0
        %v659 = vadd.f32 %v375, %v658
        %660 = vmatmul.f32.gmra.mxu0 %v393
        %v661 = vpop.f32.mrf.mxu0
        %v662 = vadd.f32 %v380, %v661
        %663 = vdwg.mxu0
        %v664 = vmax.f32 %v653, 0.0
        %v665 = vmax.f32 %v656, 0.0
        %v666 = vmax.f32 %v659, 0.0
        %v667 = vmax.f32 %v662, 0.0
        %668 = vmatpush.msra.mxu0 0.0
        %669 = vmatpush.msra.mxu0 0.0
        %670 = vmatpush.msra.mxu0 0.0
        %671 = vmatpush.msra.mxu0 0.0
        %672 = vmatpush.msra.mxu0 0.0
        %673 = vmatpush.msra.mxu0 0.0
        %674 = vmatpush.msra.mxu0 0.0
        %675 = vmatpush.msra.mxu0 0.0
        %676 = vmatpush.msra.mxu0 0.0
        %677 = vmatpush.msra.mxu0 0.0
        %678 = vmatpush.msra.mxu0 0.0
        %679 = vmatpush.msra.mxu0 0.0
        %680 = vmatpush.msra.mxu0 %v667
        %681 = vmatpush.msra.mxu0 %v666
        %682 = vmatpush.msra.mxu0 %v665
        %683 = vmatpush.msra.mxu0 %v664
        %684 = vmatmul.f32.gmra.mxu0 %v435
        %v685 = vpop.f32.mrf.mxu0
        %v686 = vadd.f32 %v431, %v685
        %687 = vdwg.mxu0
        %s688 = scalar_lea.vmem %s342, 32 [#allocation7]
        %689 = vst [vmem:[%s688] sm:$0xff] %v686
        %s690 = scalar_lea.vmem %s310, 80 [#allocation6]
        %v691 = vld [vmem:[%s690] sm:$0xff]
        %v692 = vld [vmem:[%s690 + $0x8] sm:$0xff]
        %693 = vmatpush.msra.mxu0 0.0
        %694 = vmatpush.msra.mxu0 0.0
        %695 = vmatpush.msra.mxu0 0.0
        %696 = vmatpush.msra.mxu0 0.0
        %697 = vmatpush.msra.mxu0 0.0
        %698 = vmatpush.msra.mxu0 0.0
        %699 = vmatpush.msra.mxu0 0.0
        %700 = vmatpush.msra.mxu0 0.0
        %701 = vmatpush.msra.mxu0 0.0
        %702 = vmatpush.msra.mxu0 0.0
        %703 = vmatpush.msra.mxu0 0.0
        %704 = vmatpush.msra.mxu0 0.0
        %705 = vmatpush.msra.mxu0 0.0
        %706 = vmatpush.msra.mxu0 0.0
        %707 = vmatpush.msra.mxu0 %v692
        %708 = vmatpush.msra.mxu0 %v691
        %709 = vmatmul.f32.gmra.mxu0 %v384
        %v710 = vpop.f32.mrf.mxu0
        %v711 = vadd.f32 %v365, %v710
        %712 = vmatmul.f32.gmra.mxu0 %v387
        %v713 = vpop.f32.mrf.mxu0
        %v714 = vadd.f32 %v370, %v713
        %715 = vmatmul.f32.gmra.mxu0 %v390
        %v716 = vpop.f32.mrf.mxu0
        %v717 = vadd.f32 %v375, %v716
        %718 = vmatmul.f32.gmra.mxu0 %v393
        %v719 = vpop.f32.mrf.mxu0
        %v720 = vadd.f32 %v380, %v719
        %721 = vdwg.mxu0
        %v722 = vmax.f32 %v711, 0.0
        %v723 = vmax.f32 %v714, 0.0
        %v724 = vmax.f32 %v717, 0.0
        %v725 = vmax.f32 %v720, 0.0
        %726 = vmatpush.msra.mxu0 0.0
        %727 = vmatpush.msra.mxu0 0.0
        %728 = vmatpush.msra.mxu0 0.0
        %729 = vmatpush.msra.mxu0 0.0
        %730 = vmatpush.msra.mxu0 0.0
        %731 = vmatpush.msra.mxu0 0.0
        %732 = vmatpush.msra.mxu0 0.0
        %733 = vmatpush.msra.mxu0 0.0
        %734 = vmatpush.msra.mxu0 0.0
        %735 = vmatpush.msra.mxu0 0.0
        %736 = vmatpush.msra.mxu0 0.0
        %737 = vmatpush.msra.mxu0 0.0
        %738 = vmatpush.msra.mxu0 %v725
        %739 = vmatpush.msra.mxu0 %v724
        %740 = vmatpush.msra.mxu0 %v723
        %741 = vmatpush.msra.mxu0 %v722
        %742 = vmatmul.f32.gmra.mxu0 %v435
        %v743 = vpop.f32.mrf.mxu0
        %v744 = vadd.f32 %v431, %v743
        %745 = vdwg.mxu0
        %s746 = scalar_lea.vmem %s342, 40 [#allocation7]
        %747 = vst [vmem:[%s746] sm:$0xff] %v744
        %s748 = scalar_lea.vmem %s310, 96 [#allocation6]
        %v749 = vld [vmem:[%s748] sm:$0xff]
        %v750 = vld [vmem:[%s748 + $0x8] sm:$0xff]
        %751 = vmatpush.msra.mxu0 0.0
        %752 = vmatpush.msra.mxu0 0.0
        %753 = vmatpush.msra.mxu0 0.0
        %754 = vmatpush.msra.mxu0 0.0
        %755 = vmatpush.msra.mxu0 0.0
        %756 = vmatpush.msra.mxu0 0.0
        %757 = vmatpush.msra.mxu0 0.0
        %758 = vmatpush.msra.mxu0 0.0
        %759 = vmatpush.msra.mxu0 0.0
        %760 = vmatpush.msra.mxu0 0.0
        %761 = vmatpush.msra.mxu0 0.0
        %762 = vmatpush.msra.mxu0 0.0
        %763 = vmatpush.msra.mxu0 0.0
        %764 = vmatpush.msra.mxu0 0.0
        %765 = vmatpush.msra.mxu0 %v750
        %766 = vmatpush.msra.mxu0 %v749
        %767 = vmatmul.f32.gmra.mxu0 %v384
        %v768 = vpop.f32.mrf.mxu0
        %v769 = vadd.f32 %v365, %v768
        %770 = vmatmul.f32.gmra.mxu0 %v387
        %v771 = vpop.f32.mrf.mxu0
        %v772 = vadd.f32 %v370, %v771
        %773 = vmatmul.f32.gmra.mxu0 %v390
        %v774 = vpop.f32.mrf.mxu0
        %v775 = vadd.f32 %v375, %v774
        %776 = vmatmul.f32.gmra.mxu0 %v393
        %v777 = vpop.f32.mrf.mxu0
        %v778 = vadd.f32 %v380, %v777
        %779 = vdwg.mxu0
        %v780 = vmax.f32 %v769, 0.0
        %v781 = vmax.f32 %v772, 0.0
        %v782 = vmax.f32 %v775, 0.0
        %v783 = vmax.f32 %v778, 0.0
        %784 = vmatpush.msra.mxu0 0.0
        %785 = vmatpush.msra.mxu0 0.0
        %786 = vmatpush.msra.mxu0 0.0
        %787 = vmatpush.msra.mxu0 0.0
        %788 = vmatpush.msra.mxu0 0.0
        %789 = vmatpush.msra.mxu0 0.0
        %790 = vmatpush.msra.mxu0 0.0
        %791 = vmatpush.msra.mxu0 0.0
        %792 = vmatpush.msra.mxu0 0.0
        %793 = vmatpush.msra.mxu0 0.0
        %794 = vmatpush.msra.mxu0 0.0
        %795 = vmatpush.msra.mxu0 0.0
        %796 = vmatpush.msra.mxu0 %v783
        %797 = vmatpush.msra.mxu0 %v782
        %798 = vmatpush.msra.mxu0 %v781
        %799 = vmatpush.msra.mxu0 %v780
        %800 = vmatmul.f32.gmra.mxu0 %v435
        %v801 = vpop.f32.mrf.mxu0
        %v802 = vadd.f32 %v431, %v801
        %803 = vdwg.mxu0
        %s804 = scalar_lea.vmem %s342, 48 [#allocation7]
        %805 = vst [vmem:[%s804] sm:$0xff] %v802
        %s806 = scalar_lea.vmem %s310, 112 [#allocation6]
        %v807 = vld [vmem:[%s806] sm:$0xff]
        %v808 = vld [vmem:[%s806 + $0x8] sm:$0xff]
        %809 = vmatpush.msra.mxu0 0.0
        %810 = vmatpush.msra.mxu0 0.0
        %811 = vmatpush.msra.mxu0 0.0
        %812 = vmatpush.msra.mxu0 0.0
        %813 = vmatpush.msra.mxu0 0.0
        %814 = vmatpush.msra.mxu0 0.0
        %815 = vmatpush.msra.mxu0 0.0
        %816 = vmatpush.msra.mxu0 0.0
        %817 = vmatpush.msra.mxu0 0.0
        %818 = vmatpush.msra.mxu0 0.0
        %819 = vmatpush.msra.mxu0 0.0
        %820 = vmatpush.msra.mxu0 0.0
        %821 = vmatpush.msra.mxu0 0.0
        %822 = vmatpush.msra.mxu0 0.0
        %823 = vmatpush.msra.mxu0 %v808
        %824 = vmatpush.msra.mxu0 %v807
        %825 = vmatmul.f32.gmra.mxu0 %v384
        %v826 = vpop.f32.mrf.mxu0
        %v827 = vadd.f32 %v365, %v826
        %828 = vmatmul.f32.gmra.mxu0 %v387
        %v829 = vpop.f32.mrf.mxu0
        %v830 = vadd.f32 %v370, %v829
        %831 = vmatmul.f32.gmra.mxu0 %v390
        %v832 = vpop.f32.mrf.mxu0
        %v833 = vadd.f32 %v375, %v832
        %834 = vmatmul.f32.gmra.mxu0 %v393
        %v835 = vpop.f32.mrf.mxu0
        %v836 = vadd.f32 %v380, %v835
        %837 = vdwg.mxu0
        %v838 = vmax.f32 %v827, 0.0
        %v839 = vmax.f32 %v830, 0.0
        %v840 = vmax.f32 %v833, 0.0
        %v841 = vmax.f32 %v836, 0.0
        %842 = vmatpush.msra.mxu0 0.0
        %843 = vmatpush.msra.mxu0 0.0
        %844 = vmatpush.msra.mxu0 0.0
        %845 = vmatpush.msra.mxu0 0.0
        %846 = vmatpush.msra.mxu0 0.0
        %847 = vmatpush.msra.mxu0 0.0
        %848 = vmatpush.msra.mxu0 0.0
        %849 = vmatpush.msra.mxu0 0.0
        %850 = vmatpush.msra.mxu0 0.0
        %851 = vmatpush.msra.mxu0 0.0
        %852 = vmatpush.msra.mxu0 0.0
        %853 = vmatpush.msra.mxu0 0.0
        %854 = vmatpush.msra.mxu0 %v841
        %855 = vmatpush.msra.mxu0 %v840
        %856 = vmatpush.msra.mxu0 %v839
        %857 = vmatpush.msra.mxu0 %v838
        %858 = vmatmul.f32.gmra.mxu0 %v435
        %v859 = vpop.f32.mrf.mxu0
        %v860 = vadd.f32 %v431, %v859
        %861 = vdwg.mxu0
        %s862 = scalar_lea.vmem %s342, 56 [#allocation7]
        %863 = vst [vmem:[%s862] sm:$0xff] %v860
        %v864 = vld [vmem:[%s6] sm:$0xff]
        %s865 = sld [smem:[#allocation2]]
        %v866 = vld [vmem:[%s342] sm:$0xff]
        %v867 = vstv %s865
        %v868 = vmul.f32 %v867, %v866
        %870 = vset.pattern.permute.xlu0 0
        %871 = vperm.xlu0 %870, %v864
        %v872 = vpop.permute.xlu0 %871
        %v874 = vadd.f32 %v872, %v868
        %s875 = sld [smem:[#allocation2 + $0x1]]
        %v876 = vld [vmem:[%s514] sm:$0xff]
        %v877 = vstv %s875
        %v878 = vmul.f32 %v877, %v876
        %v879 = vadd.f32 %v874, %v878
        %s880 = sld [smem:[#allocation2 + $0x2]]
        %v881 = vld [vmem:[%s572] sm:$0xff]
        %v882 = vstv %s880
        %v883 = vmul.f32 %v882, %v881
        %v884 = vadd.f32 %v879, %v883
        %s885 = sld [smem:[#allocation2 + $0x3]]
        %v886 = vld [vmem:[%s630] sm:$0xff]
        %v887 = vstv %s885
        %v888 = vmul.f32 %v887, %v886
        %v889 = vadd.f32 %v884, %v888
        %s890 = sld [smem:[#allocation2 + $0x4]]
        %v891 = vld [vmem:[%s688] sm:$0xff]
        %v892 = vstv %s890
        %v893 = vmul.f32 %v892, %v891
        %v894 = vadd.f32 %v889, %v893
        %s895 = sld [smem:[#allocation2 + $0x5]]
        %v896 = vld [vmem:[%s746] sm:$0xff]
        %v897 = vstv %s895
        %v898 = vmul.f32 %v897, %v896
        %v899 = vadd.f32 %v894, %v898
        %s900 = sld [smem:[#allocation2 + $0x6]]
        %v901 = vld [vmem:[%s804] sm:$0xff]
        %v902 = vstv %s900
        %v903 = vmul.f32 %v902, %v901
        %v904 = vadd.f32 %v899, %v903
        %s905 = sld [smem:[#allocation2 + $0x7]]
        %v906 = vld [vmem:[%s862] sm:$0xff]
        %v907 = vstv %s905
        %v908 = vmul.f32 %v907, %v906
        %v909 = vadd.f32 %v904, %v908
        %910 = vst [vmem:[%s349] sm:$0xff] %v909
        %s911 = scalar_lea.vmem %s6, 8
        %v912 = vld [vmem:[%s911] sm:$0xff]
        %s913 = sld [smem:[#allocation2 + $0x80]]
        %v914 = vld [vmem:[%s342] sm:$0xff]
        %v915 = vstv %s913
        %v916 = vmul.f32 %v915, %v914
        %918 = vset.pattern.permute.xlu0 0
        %919 = vperm.xlu0 %918, %v912
        %v920 = vpop.permute.xlu0 %919
        %v922 = vadd.f32 %v920, %v916
        %s923 = sld [smem:[#allocation2 + $0x81]]
        %v924 = vld [vmem:[%s514] sm:$0xff]
        %v925 = vstv %s923
        %v926 = vmul.f32 %v925, %v924
        %v927 = vadd.f32 %v922, %v926
        %s928 = sld [smem:[#allocation2 + $0x82]]
        %v929 = vld [vmem:[%s572] sm:$0xff]
        %v930 = vstv %s928
        %v931 = vmul.f32 %v930, %v929
        %v932 = vadd.f32 %v927, %v931
        %s933 = sld [smem:[#allocation2 + $0x83]]
        %v934 = vld [vmem:[%s630] sm:$0xff]
        %v935 = vstv %s933
        %v936 = vmul.f32 %v935, %v934
        %v937 = vadd.f32 %v932, %v936
        %s938 = sld [smem:[#allocation2 + $0x84]]
        %v939 = vld [vmem:[%s688] sm:$0xff]
        %v940 = vstv %s938
        %v941 = vmul.f32 %v940, %v939
        %v942 = vadd.f32 %v937, %v941
        %s943 = sld [smem:[#allocation2 + $0x85]]
        %v944 = vld [vmem:[%s746] sm:$0xff]
        %v945 = vstv %s943
        %v946 = vmul.f32 %v945, %v944
        %v947 = vadd.f32 %v942, %v946
        %s948 = sld [smem:[#allocation2 + $0x86]]
        %v949 = vld [vmem:[%s804] sm:$0xff]
        %v950 = vstv %s948
        %v951 = vmul.f32 %v950, %v949
        %v952 = vadd.f32 %v947, %v951
        %s953 = sld [smem:[#allocation2 + $0x87]]
        %v954 = vld [vmem:[%s862] sm:$0xff]
        %v955 = vstv %s953
        %v956 = vmul.f32 %v955, %v954
        %v957 = vadd.f32 %v952, %v956
        %s958 = scalar_lea.vmem %s349, 8 [#allocation8]
        %959 = vst [vmem:[%s958] sm:$0xff] %v957
        %s960 = scalar_lea.vmem %s6, 16
        %v961 = vld [vmem:[%s960] sm:$0xff]
        %s962 = sld [smem:[#allocation2 + $0x100]]
        %v963 = vld [vmem:[%s342] sm:$0xff]
        %v964 = vstv %s962
        %v965 = vmul.f32 %v964, %v963
        %967 = vset.pattern.permute.xlu0 0
        %968 = vperm.xlu0 %967, %v961
        %v969 = vpop.permute.xlu0 %968
        %v971 = vadd.f32 %v969, %v965
        %s972 = sld [smem:[#allocation2 + $0x101]]
        %v973 = vld [vmem:[%s514] sm:$0xff]
        %v974 = vstv %s972
        %v975 = vmul.f32 %v974, %v973
        %v976 = vadd.f32 %v971, %v975
        %s977 = sld [smem:[#allocation2 + $0x102]]
        %v978 = vld [vmem:[%s572] sm:$0xff]
        %v979 = vstv %s977
        %v980 = vmul.f32 %v979, %v978
        %v981 = vadd.f32 %v976, %v980
        %s982 = sld [smem:[#allocation2 + $0x103]]
        %v983 = vld [vmem:[%s630] sm:$0xff]
        %v984 = vstv %s982
        %v985 = vmul.f32 %v984, %v983
        %v986 = vadd.f32 %v981, %v985
        %s987 = sld [smem:[#allocation2 + $0x104]]
        %v988 = vld [vmem:[%s688] sm:$0xff]
        %v989 = vstv %s987
        %v990 = vmul.f32 %v989, %v988
        %v991 = vadd.f32 %v986, %v990
        %s992 = sld [smem:[#allocation2 + $0x105]]
        %v993 = vld [vmem:[%s746] sm:$0xff]
        %v994 = vstv %s992
        %v995 = vmul.f32 %v994, %v993
        %v996 = vadd.f32 %v991, %v995
        %s997 = sld [smem:[#allocation2 + $0x106]]
        %v998 = vld [vmem:[%s804] sm:$0xff]
        %v999 = vstv %s997
        %v1000 = vmul.f32 %v999, %v998
        %v1001 = vadd.f32 %v996, %v1000
        %s1002 = sld [smem:[#allocation2 + $0x107]]
        %v1003 = vld [vmem:[%s862] sm:$0xff]
        %v1004 = vstv %s1002
        %v1005 = vmul.f32 %v1004, %v1003
        %v1006 = vadd.f32 %v1001, %v1005
        %s1007 = scalar_lea.vmem %s349, 16 [#allocation8]
        %1008 = vst [vmem:[%s1007] sm:$0xff] %v1006
        %s1009 = scalar_lea.vmem %s6, 24
        %v1010 = vld [vmem:[%s1009] sm:$0xff]
        %s1011 = sld [smem:[#allocation2 + $0x180]]
        %v1012 = vld [vmem:[%s342] sm:$0xff]
        %v1013 = vstv %s1011
        %v1014 = vmul.f32 %v1013, %v1012
        %1016 = vset.pattern.permute.xlu0 0
        %1017 = vperm.xlu0 %1016, %v1010
        %v1018 = vpop.permute.xlu0 %1017
        %v1020 = vadd.f32 %v1018, %v1014
        %s1021 = sld [smem:[#allocation2 + $0x181]]
        %v1022 = vld [vmem:[%s514] sm:$0xff]
        %v1023 = vstv %s1021
        %v1024 = vmul.f32 %v1023, %v1022
        %v1025 = vadd.f32 %v1020, %v1024
        %s1026 = sld [smem:[#allocation2 + $0x182]]
        %v1027 = vld [vmem:[%s572] sm:$0xff]
        %v1028 = vstv %s1026
        %v1029 = vmul.f32 %v1028, %v1027
        %v1030 = vadd.f32 %v1025, %v1029
        %s1031 = sld [smem:[#allocation2 + $0x183]]
        %v1032 = vld [vmem:[%s630] sm:$0xff]
        %v1033 = vstv %s1031
        %v1034 = vmul.f32 %v1033, %v1032
        %v1035 = vadd.f32 %v1030, %v1034
        %s1036 = sld [smem:[#allocation2 + $0x184]]
        %v1037 = vld [vmem:[%s688] sm:$0xff]
        %v1038 = vstv %s1036
        %v1039 = vmul.f32 %v1038, %v1037
        %v1040 = vadd.f32 %v1035, %v1039
        %s1041 = sld [smem:[#allocation2 + $0x185]]
        %v1042 = vld [vmem:[%s746] sm:$0xff]
        %v1043 = vstv %s1041
        %v1044 = vmul.f32 %v1043, %v1042
        %v1045 = vadd.f32 %v1040, %v1044
        %s1046 = sld [smem:[#allocation2 + $0x186]]
        %v1047 = vld [vmem:[%s804] sm:$0xff]
        %v1048 = vstv %s1046
        %v1049 = vmul.f32 %v1048, %v1047
        %v1050 = vadd.f32 %v1045, %v1049
        %s1051 = sld [smem:[#allocation2 + $0x187]]
        %v1052 = vld [vmem:[%s862] sm:$0xff]
        %v1053 = vstv %s1051
        %v1054 = vmul.f32 %v1053, %v1052
        %v1055 = vadd.f32 %v1050, %v1054
        %s1056 = scalar_lea.vmem %s349, 24 [#allocation8]
        %1057 = vst [vmem:[%s1056] sm:$0xff] %v1055
        %s1058 = scalar_lea.vmem %s6, 32
        %v1059 = vld [vmem:[%s1058] sm:$0xff]
        %s1060 = sld [smem:[#allocation2 + $0x200]]
        %v1061 = vld [vmem:[%s342] sm:$0xff]
        %v1062 = vstv %s1060
        %v1063 = vmul.f32 %v1062, %v1061
        %1065 = vset.pattern.permute.xlu0 0
        %1066 = vperm.xlu0 %1065, %v1059
        %v1067 = vpop.permute.xlu0 %1066
        %v1069 = vadd.f32 %v1067, %v1063
        %s1070 = sld [smem:[#allocation2 + $0x201]]
        %v1071 = vld [vmem:[%s514] sm:$0xff]
        %v1072 = vstv %s1070
        %v1073 = vmul.f32 %v1072, %v1071
        %v1074 = vadd.f32 %v1069, %v1073
        %s1075 = sld [smem:[#allocation2 + $0x202]]
        %v1076 = vld [vmem:[%s572] sm:$0xff]
        %v1077 = vstv %s1075
        %v1078 = vmul.f32 %v1077, %v1076
        %v1079 = vadd.f32 %v1074, %v1078
        %s1080 = sld [smem:[#allocation2 + $0x203]]
        %v1081 = vld [vmem:[%s630] sm:$0xff]
        %v1082 = vstv %s1080
        %v1083 = vmul.f32 %v1082, %v1081
        %v1084 = vadd.f32 %v1079, %v1083
        %s1085 = sld [smem:[#allocation2 + $0x204]]
        %v1086 = vld [vmem:[%s688] sm:$0xff]
        %v1087 = vstv %s1085
        %v1088 = vmul.f32 %v1087, %v1086
        %v1089 = vadd.f32 %v1084, %v1088
        %s1090 = sld [smem:[#allocation2 + $0x205]]
        %v1091 = vld [vmem:[%s746] sm:$0xff]
        %v1092 = vstv %s1090
        %v1093 = vmul.f32 %v1092, %v1091
        %v1094 = vadd.f32 %v1089, %v1093
        %s1095 = sld [smem:[#allocation2 + $0x206]]
        %v1096 = vld [vmem:[%s804] sm:$0xff]
        %v1097 = vstv %s1095
        %v1098 = vmul.f32 %v1097, %v1096
        %v1099 = vadd.f32 %v1094, %v1098
        %s1100 = sld [smem:[#allocation2 + $0x207]]
        %v1101 = vld [vmem:[%s862] sm:$0xff]
        %v1102 = vstv %s1100
        %v1103 = vmul.f32 %v1102, %v1101
        %v1104 = vadd.f32 %v1099, %v1103
        %s1105 = scalar_lea.vmem %s349, 32 [#allocation8]
        %1106 = vst [vmem:[%s1105] sm:$0xff] %v1104
        %s1107 = scalar_lea.vmem %s6, 40
        %v1108 = vld [vmem:[%s1107] sm:$0xff]
        %s1109 = sld [smem:[#allocation2 + $0x280]]
        %v1110 = vld [vmem:[%s342] sm:$0xff]
        %v1111 = vstv %s1109
        %v1112 = vmul.f32 %v1111, %v1110
        %1114 = vset.pattern.permute.xlu0 0
        %1115 = vperm.xlu0 %1114, %v1108
        %v1116 = vpop.permute.xlu0 %1115
        %v1118 = vadd.f32 %v1116, %v1112
        %s1119 = sld [smem:[#allocation2 + $0x281]]
        %v1120 = vld [vmem:[%s514] sm:$0xff]
        %v1121 = vstv %s1119
        %v1122 = vmul.f32 %v1121, %v1120
        %v1123 = vadd.f32 %v1118, %v1122
        %s1124 = sld [smem:[#allocation2 + $0x282]]
        %v1125 = vld [vmem:[%s572] sm:$0xff]
        %v1126 = vstv %s1124
        %v1127 = vmul.f32 %v1126, %v1125
        %v1128 = vadd.f32 %v1123, %v1127
        %s1129 = sld [smem:[#allocation2 + $0x283]]
        %v1130 = vld [vmem:[%s630] sm:$0xff]
        %v1131 = vstv %s1129
        %v1132 = vmul.f32 %v1131, %v1130
        %v1133 = vadd.f32 %v1128, %v1132
        %s1134 = sld [smem:[#allocation2 + $0x284]]
        %v1135 = vld [vmem:[%s688] sm:$0xff]
        %v1136 = vstv %s1134
        %v1137 = vmul.f32 %v1136, %v1135
        %v1138 = vadd.f32 %v1133, %v1137
        %s1139 = sld [smem:[#allocation2 + $0x285]]
        %v1140 = vld [vmem:[%s746] sm:$0xff]
        %v1141 = vstv %s1139
        %v1142 = vmul.f32 %v1141, %v1140
        %v1143 = vadd.f32 %v1138, %v1142
        %s1144 = sld [smem:[#allocation2 + $0x286]]
        %v1145 = vld [vmem:[%s804] sm:$0xff]
        %v1146 = vstv %s1144
        %v1147 = vmul.f32 %v1146, %v1145
        %v1148 = vadd.f32 %v1143, %v1147
        %s1149 = sld [smem:[#allocation2 + $0x287]]
        %v1150 = vld [vmem:[%s862] sm:$0xff]
        %v1151 = vstv %s1149
        %v1152 = vmul.f32 %v1151, %v1150
        %v1153 = vadd.f32 %v1148, %v1152
        %s1154 = scalar_lea.vmem %s349, 40 [#allocation8]
        %1155 = vst [vmem:[%s1154] sm:$0xff] %v1153
        %s1156 = scalar_lea.vmem %s6, 48
        %v1157 = vld [vmem:[%s1156] sm:$0xff]
        %s1158 = sld [smem:[#allocation2 + $0x300]]
        %v1159 = vld [vmem:[%s342] sm:$0xff]
        %v1160 = vstv %s1158
        %v1161 = vmul.f32 %v1160, %v1159
        %1163 = vset.pattern.permute.xlu0 0
        %1164 = vperm.xlu0 %1163, %v1157
        %v1165 = vpop.permute.xlu0 %1164
        %v1167 = vadd.f32 %v1165, %v1161
        %s1168 = sld [smem:[#allocation2 + $0x301]]
        %v1169 = vld [vmem:[%s514] sm:$0xff]
        %v1170 = vstv %s1168
        %v1171 = vmul.f32 %v1170, %v1169
        %v1172 = vadd.f32 %v1167, %v1171
        %s1173 = sld [smem:[#allocation2 + $0x302]]
        %v1174 = vld [vmem:[%s572] sm:$0xff]
        %v1175 = vstv %s1173
        %v1176 = vmul.f32 %v1175, %v1174
        %v1177 = vadd.f32 %v1172, %v1176
        %s1178 = sld [smem:[#allocation2 + $0x303]]
        %v1179 = vld [vmem:[%s630] sm:$0xff]
        %v1180 = vstv %s1178
        %v1181 = vmul.f32 %v1180, %v1179
        %v1182 = vadd.f32 %v1177, %v1181
        %s1183 = sld [smem:[#allocation2 + $0x304]]
        %v1184 = vld [vmem:[%s688] sm:$0xff]
        %v1185 = vstv %s1183
        %v1186 = vmul.f32 %v1185, %v1184
        %v1187 = vadd.f32 %v1182, %v1186
        %s1188 = sld [smem:[#allocation2 + $0x305]]
        %v1189 = vld [vmem:[%s746] sm:$0xff]
        %v1190 = vstv %s1188
        %v1191 = vmul.f32 %v1190, %v1189
        %v1192 = vadd.f32 %v1187, %v1191
        %s1193 = sld [smem:[#allocation2 + $0x306]]
        %v1194 = vld [vmem:[%s804] sm:$0xff]
        %v1195 = vstv %s1193
        %v1196 = vmul.f32 %v1195, %v1194
        %v1197 = vadd.f32 %v1192, %v1196
        %s1198 = sld [smem:[#allocation2 + $0x307]]
        %v1199 = vld [vmem:[%s862] sm:$0xff]
        %v1200 = vstv %s1198
        %v1201 = vmul.f32 %v1200, %v1199
        %v1202 = vadd.f32 %v1197, %v1201
        %s1203 = scalar_lea.vmem %s349, 48 [#allocation8]
        %1204 = vst [vmem:[%s1203] sm:$0xff] %v1202
        %s1205 = scalar_lea.vmem %s6, 56
        %v1206 = vld [vmem:[%s1205] sm:$0xff]
        %s1207 = sld [smem:[#allocation2 + $0x380]]
        %v1208 = vld [vmem:[%s342] sm:$0xff]
        %v1209 = vstv %s1207
        %v1210 = vmul.f32 %v1209, %v1208
        %1212 = vset.pattern.permute.xlu0 0
        %1213 = vperm.xlu0 %1212, %v1206
        %v1214 = vpop.permute.xlu0 %1213
        %v1216 = vadd.f32 %v1214, %v1210
        %s1217 = sld [smem:[#allocation2 + $0x381]]
        %v1218 = vld [vmem:[%s514] sm:$0xff]
        %v1219 = vstv %s1217
        %v1220 = vmul.f32 %v1219, %v1218
        %v1221 = vadd.f32 %v1216, %v1220
        %s1222 = sld [smem:[#allocation2 + $0x382]]
        %v1223 = vld [vmem:[%s572] sm:$0xff]
        %v1224 = vstv %s1222
        %v1225 = vmul.f32 %v1224, %v1223
        %v1226 = vadd.f32 %v1221, %v1225
        %s1227 = sld [smem:[#allocation2 + $0x383]]
        %v1228 = vld [vmem:[%s630] sm:$0xff]
        %v1229 = vstv %s1227
        %v1230 = vmul.f32 %v1229, %v1228
        %v1231 = vadd.f32 %v1226, %v1230
        %s1232 = sld [smem:[#allocation2 + $0x384]]
        %v1233 = vld [vmem:[%s688] sm:$0xff]
        %v1234 = vstv %s1232
        %v1235 = vmul.f32 %v1234, %v1233
        %v1236 = vadd.f32 %v1231, %v1235
        %s1237 = sld [smem:[#allocation2 + $0x385]]
        %v1238 = vld [vmem:[%s746] sm:$0xff]
        %v1239 = vstv %s1237
        %v1240 = vmul.f32 %v1239, %v1238
        %v1241 = vadd.f32 %v1236, %v1240
        %s1242 = sld [smem:[#allocation2 + $0x386]]
        %v1243 = vld [vmem:[%s804] sm:$0xff]
        %v1244 = vstv %s1242
        %v1245 = vmul.f32 %v1244, %v1243
        %v1246 = vadd.f32 %v1241, %v1245
        %s1247 = sld [smem:[#allocation2 + $0x387]]
        %v1248 = vld [vmem:[%s862] sm:$0xff]
        %v1249 = vstv %s1247
        %v1250 = vmul.f32 %v1249, %v1248
        %v1251 = vadd.f32 %v1246, %v1250
        %s1252 = scalar_lea.vmem %s349, 56 [#allocation8]
        %1253 = vst [vmem:[%s1252] sm:$0xff] %v1251
        %s1254 = sand.u32 %s190, 1
        %s1255 = scalar_lea.sflag [#allocation4], %s1254
        %s1256 = sand.u32 %s190, 1
        %s1257 = smul.addr %s1256, 64
        %s1258 = scalar_lea.vmem [#allocation7], %s1257
        %s1259 = sand.u32 %s216, 1
        %s1260 = scalar_lea.sflag [#allocation9], %s1259
        %s1261 = sand.u32 %s216, 1
        %s1262 = smul.addr %s1261, 64
        %s1263 = scalar_lea.vmem [#allocation8], %s1262
        // Predicated region
        $region57: #{tpu_custom_call.1} parent=47 // pred_check
          %p1264 = pneg %p200
        $region58: #{tpu_custom_call.1} parent=47 // pred_check_branch
          %1266 = sbr.rel (%p1264) target = $region60
        $region59: #{tpu_custom_call.1} parent=47 // pred_region
          %1268 = vsyncadd %s1255, 0
          %s1269 = smul.addr %s30, 8
          %s1270 = scalar_lea.hbm %s7, %s1269
          %s1271 = sshll.u32 %s1258, 4
          %s1272 = int_to_ptr.vmem [resolvable:$true] %s1271
          %s1273 = sshll.u32 %s1270, 4
          %s1274 = int_to_ptr.hbm [resolvable:$true] %s1273
          %1279 = dma.vmem_to_hbm [thread:$0]  %s1272, 1024, %s1274, %s1255, 128, 256, 8
        $region60: #{tpu_custom_call.1} parent=47 // pred_fallthru
          _
        // Predicated region
        $region61: #{tpu_custom_call.1} parent=47 // pred_check
          %p1280 = pneg %p226
        $region62: #{tpu_custom_call.1} parent=47 // pred_check_branch
          %1282 = sbr.rel (%p1280) target = $region64
        $region63: #{tpu_custom_call.1} parent=47 // pred_region
          %1284 = vsyncadd %s1260, 0
          %s1285 = smul.addr %s30, 8
          %s1286 = scalar_lea.hbm %s8, %s1285
          %s1287 = sshll.u32 %s1263, 4
          %s1288 = int_to_ptr.vmem [resolvable:$true] %s1287
          %s1289 = sshll.u32 %s1286, 4
          %s1290 = int_to_ptr.hbm [resolvable:$true] %s1289
          %1295 = dma.vmem_to_hbm [thread:$0]  %s1288, 1024, %s1290, %s1260, 128, 256, 8
        $region64: #{tpu_custom_call.1} parent=47 // pred_fallthru
          _
      $region48: #{tpu_custom_call.1} parent=5 // pred_fallthru
        _
      %p1296 = scmp.le.s32.totalorder 2, %s25
      // Predicated region
      $region65: #{tpu_custom_call.1} parent=5 // pred_check
        %p1297 = pneg %p1296
      $region66: #{tpu_custom_call.1} parent=5 // pred_check_branch
        %1299 = sbr.rel (%p1297) target = $region68
      $region67: #{tpu_custom_call.1} parent=5 // pred_region
        %s1300 = ssub.s32 %s25, 2
        // Predicated region
        $region69: #{tpu_custom_call.1} parent=67 // pred_check
          %p1301 = pneg %p206
        $region70: #{tpu_custom_call.1} parent=67 // pred_check_branch
          %1303 = sbr.rel (%p1301) target = $region72
        $region71: #{tpu_custom_call.1} parent=67 // pred_region
          %s1304 = sand.u32 %s191, 1
          %s1305 = scalar_lea.sflag [#allocation4], %s1304
          %s1306 = sand.u32 %s191, 1
          %s1307 = smul.addr %s1306, 64
          %s1308 = scalar_lea.vmem [#allocation7], %s1307
          %1310 = dma.done %s1305, 1024
        $region72: #{tpu_custom_call.1} parent=67 // pred_fallthru
          _
        // Predicated region
        $region73: #{tpu_custom_call.1} parent=67 // pred_check
          %p1311 = pneg %p232
        $region74: #{tpu_custom_call.1} parent=67 // pred_check_branch
          %1313 = sbr.rel (%p1311) target = $region76
        $region75: #{tpu_custom_call.1} parent=67 // pred_region
          %s1314 = sand.u32 %s217, 1
          %s1315 = scalar_lea.sflag [#allocation9], %s1314
          %s1316 = sand.u32 %s217, 1
          %s1317 = smul.addr %s1316, 64
          %s1318 = scalar_lea.vmem [#allocation8], %s1317
          %1320 = dma.done %s1315, 1024
        $region76: #{tpu_custom_call.1} parent=67 // pred_fallthru
          _
      $region68: #{tpu_custom_call.1} parent=5 // pred_fallthru
        _
    $region6: #{tpu_custom_call.1} parent=1 // loop_footer
      %s29 = sadd.s32 1, %s25
    $region7: #{tpu_custom_call.1} parent=1 // loop_footer_branch
      %24 = sbr.rel target = $region3
    $region8: #{tpu_custom_call.1} parent=1 // loop_exit
      _
    %1321 = vsyncpa [#allocation3], 1
    %s1322 = scalar_lea.sflag [#allocation3], 1
    %1323 = vsyncpa %s1322, 1
    %1324 = vsyncpa [#allocation4], 1
    %s1325 = scalar_lea.sflag [#allocation4], 1
    %1326 = vsyncpa %s1325, 1
    %1327 = vsyncpa [#allocation9], 1
    %s1328 = scalar_lea.sflag [#allocation9], 1
    %1329 = vsyncpa %s1328, 1
    %1330 = vsyncpa [#allocation5], 1
    %s1331 = scalar_lea.sflag [#allocation5], 1
    %1332 = vsyncpa %s1331, 1

</llo_original>
